<compile_context>
chip_gen: v5e
topology: v5e:2x2
jax: 0.10.0
libtpu: 0.0.40
codegen_flags: <defaults>
</compile_context>

<pallas_src>
import functools

import jax
import jax.numpy as jnp
from jax.experimental import pallas as pl
from jax.experimental.pallas import tpu as pltpu


def _round_up(x, m):
    return (x + m - 1) // m * m


def lstm_clf_kernel(x_ref, len_ref, w_ih_ref, w_hh_ref, b_ref,
                    w_clf_ref, b_clf_ref, out_ref, zx_ref, *, T):
    TB, Dp = x_ref.shape
    Bp = TB // T
    Hp = w_hh_ref.shape[0]

    # --- hoisted input projection: one (T*Bp, Dp) x (Dp, 4Hp) bf16 MXU matmul,
    # f32 accumulation, parked in a flat 2-D VMEM scratch (no reshape).
    zx_ref[...] = (jnp.dot(x_ref[...], w_ih_ref[...],
                           preferred_element_type=jnp.float32)
                   + b_ref[...])

    lengths = len_ref[...]                  # (Bp, 1) int32, loaded once

    # NOTE(correctness): padded lanes/rows of h and c must stay exactly zero.
    # This holds because (a) h and c start at 0, (b) padded weight rows/cols and
    # padded bias lanes are zero, so padded g = tanh(0) = 0 and therefore
    # padded c_new = f*0 + i*0 = 0 and h_new = o*tanh(0) = 0, even though the
    # padded sigmoid gates evaluate to 0.5.  Do NOT initialize c nonzero or put
    # nonzero values into padded bias lanes.
    h = jnp.zeros((Bp, Hp), jnp.float32)
    c = jnp.zeros((Bp, Hp), jnp.float32)

    # --- fully-unrolled recurrence: only the bf16 h @ W_hh matmul sits on the
    # serial critical path (one MXU push per step).
    # TODO(synk): switch to lax.fori_loop(..., unroll=True) if T grows large.
    for t in range(T):
        zx_t = zx_ref[t * Bp:(t + 1) * Bp, :]                       # (Bp, 4Hp) f32
        z = zx_t + jnp.dot(h.astype(jnp.bfloat16), w_hh_ref[...],
                           preferred_element_type=jnp.float32)      # (Bp, 4Hp) f32
        # padded gate order is (i, f, o, g): one wide sigmoid over 3*Hp lanes,
        # one tanh over the trailing Hp lanes.
        sig = jax.nn.sigmoid(z[:, :3 * Hp])
        i = sig[:, 0 * Hp:1 * Hp]
        f = sig[:, 1 * Hp:2 * Hp]
        o = sig[:, 2 * Hp:3 * Hp]
        g = jnp.tanh(z[:, 3 * Hp:4 * Hp])
        c_new = f * c + i * g
        h_new = o * jnp.tanh(c_new)
        # packed-sequence semantics: freeze state once t >= length[b]
        valid = lengths > t                                         # (Bp, 1) bool
        h = jnp.where(valid, h_new, h)
        c = jnp.where(valid, c_new, c)

    # --- classifier on the last valid hidden state h_n (lane-dense output)
    out_ref[...] = (jnp.dot(h.astype(jnp.bfloat16), w_clf_ref[...],
                            preferred_element_type=jnp.float32)
                    + b_clf_ref[...])


def init_params(key, input_size, hidden_size, num_classes):
    """PyTorch-layout LSTM + Linear params (unpadded f32, transposed for x @ W)."""
    k_ih, k_hh, k_bih, k_bhh, k_w, k_b = jax.random.split(key, 6)
    bound = 1.0 / jnp.sqrt(hidden_size)
    # nn.LSTM param shapes: W_ih (4H, D), W_hh (4H, H), biases (4H,)
    w_ih = jax.random.uniform(k_ih, (4 * hidden_size, input_size),
                              jnp.float32, -bound, bound)
    w_hh = jax.random.uniform(k_hh, (4 * hidden_size, hidden_size),
                              jnp.float32, -bound, bound)
    b_ih = jax.random.uniform(k_bih, (4 * hidden_size,), jnp.float32, -bound, bound)
    b_hh = jax.random.uniform(k_bhh, (4 * hidden_size,), jnp.float32, -bound, bound)
    # nn.Linear(hidden_size, num_classes): weight (C, H), bias (C,)
    w_clf = jax.random.uniform(k_w, (num_classes, hidden_size),
                               jnp.float32, -bound, bound)
    b_clf = jax.random.uniform(k_b, (num_classes,), jnp.float32, -bound, bound)
    return {
        "w_ih_t": w_ih.T,                               # (D, 4H)
        "w_hh_t": w_hh.T,                               # (H, 4H)
        "b": (b_ih + b_hh).reshape(1, 4 * hidden_size), # (1, 4H)
        "w_clf_t": w_clf.T,                             # (H, C)
        "b_clf": b_clf.reshape(1, num_classes),         # (1, C)
    }


def pad_params_for_kernel(params, input_size, hidden_size, num_classes):
    """Zero-pad params so each gate occupies a lane-aligned 128-wide block.

    Padded gate layout is (i, f, o, g) and MXU-side weights are cast to bf16;
    biases stay f32 (they're added to the f32 accumulators in-kernel).
    """
    D, H, C = input_size, hidden_size, num_classes
    Dp = _round_up(D, 128)
    Hp = _round_up(H, 128)
    Cp = _round_up(C, 128)

    w_ih = params["w_ih_t"]      # (D, 4H)   PyTorch gate order: i, f, g, o
    w_hh = params["w_hh_t"]      # (H, 4H)
    b = params["b"]              # (1, 4H)

    gate_order = (0, 1, 3, 2)    # padded slot -> original PyTorch gate index

    w_ih_p = jnp.zeros((Dp, 4, Hp), jnp.float32)
    w_hh_p = jnp.zeros((Hp, 4, Hp), jnp.float32)
    b_p = jnp.zeros((1, 4, Hp), jnp.float32)
    for slot, g in enumerate(gate_order):
        w_ih_p = w_ih_p.at[:D, slot, :H].set(w_ih[:, g * H:(g + 1) * H])
        w_hh_p = w_hh_p.at[:H, slot, :H].set(w_hh[:, g * H:(g + 1) * H])
        b_p = b_p.at[:, slot, :H].set(b[:, g * H:(g + 1) * H])

    w_clf_p = jnp.zeros((Hp, Cp), jnp.float32).at[:H, :C].set(params["w_clf_t"])
    b_clf_p = jnp.zeros((1, Cp), jnp.float32).at[:, :C].set(params["b_clf"])

    return {
        "w_ih": w_ih_p.reshape(Dp, 4 * Hp).astype(jnp.bfloat16),   # (Dp, 4Hp)
        "w_hh": w_hh_p.reshape(Hp, 4 * Hp).astype(jnp.bfloat16),   # (Hp, 4Hp)
        "b": b_p.reshape(1, 4 * Hp),                               # (1, 4Hp) f32
        "w_clf": w_clf_p.astype(jnp.bfloat16),                     # (Hp, Cp)
        "b_clf": b_clf_p,                                          # (1, Cp) f32
        "dims": (D, H, C, Dp, Hp, Cp),
    }


def net_forward(x_btd, lengths, kparams):
    """x_btd: [B, T, D] float32, lengths: [B] int -> logits [B, num_classes]."""
    B, T, D = x_btd.shape
    D_, H, C, Dp, Hp, Cp = kparams["dims"]
    assert D == D_
    Bp = _round_up(max(B, 8), 8)

    # time-major, zero-padded, flattened to (T*Bp, Dp), bf16 (MXU-ready).
    # These prep ops fuse under the surrounding jax.jit.
    x_tbd = jnp.transpose(x_btd, (1, 0, 2)).astype(jnp.bfloat16)
    x_pad = jnp.zeros((T, Bp, Dp), jnp.bfloat16).at[:, :B, :D].set(x_tbd)
    x_pad = x_pad.reshape(T * Bp, Dp)
    len_pad = jnp.zeros((Bp, 1), jnp.int32).at[:B, 0].set(
        lengths.astype(jnp.int32))

    vmem = lambda: pl.BlockSpec(memory_space=pltpu.MemorySpace.VMEM)
    out = pl.pallas_call(
        functools.partial(lstm_clf_kernel, T=T),
        out_shape=jax.ShapeDtypeStruct((Bp, Cp), jnp.float32),
        in_specs=[vmem() for _ in range(7)],
        out_specs=vmem(),
        scratch_shapes=[pltpu.VMEM((T * Bp, 4 * Hp), jnp.float32)],  # hoisted x-proj
    )(x_pad, len_pad, kparams["w_ih"], kparams["w_hh"], kparams["b"],
      kparams["w_clf"], kparams["b_clf"])
    return out[:B, :C]


def reference_forward(x, lengths, params):
    """Pure-JAX f32 reference of the same forward pass (unpadded params)."""
    B, T, D = x.shape
    H = params["w_hh_t"].shape[0]
    h = jnp.zeros((B, H), jnp.float32)
    c = jnp.zeros((B, H), jnp.float32)
    for t in range(T):
        z = x[:, t] @ params["w_ih_t"] + h @ params["w_hh_t"] + params["b"]
        i = jax.nn.sigmoid(z[:, :H])
        f = jax.nn.sigmoid(z[:, H:2 * H])
        g = jnp.tanh(z[:, 2 * H:3 * H])
        o = jax.nn.sigmoid(z[:, 3 * H:])
        c_new = f * c + i * g
        h_new = o * jnp.tanh(c_new)
        valid = (t < lengths)[:, None]
        h = jnp.where(valid, h_new, h)
        c = jnp.where(valid, c_new, c)
    return h @ params["w_clf_t"] + params["b_clf"]


if __name__ == "__main__":
    B, T, D = 2, 8, 16          # batch, seq len, input_size
    H, C = 40, 10               # hidden_size (module default), num_classes

    key = jax.random.PRNGKey(0)
    kx, kp = jax.random.split(key)
    x = jax.random.normal(kx, (B, T, D), jnp.float32)
    lengths = jnp.array([T, 5], dtype=jnp.int32)

    params = init_params(kp, D, H, C)
    kparams = pad_params_for_kernel(params, D, H, C)

    # jit end-to-end: pad/transpose/slice fuse with the pallas_call launch.
    fwd = jax.jit(lambda xx, ll: net_forward(xx, ll, kparams))
    out = jax.block_until_ready(fwd(x, lengths))

    ref = reference_forward(x, lengths, params)
    assert out.shape == (B, C)
    # bf16 MXU operands -> tolerance relaxed relative to the pure-f32 reference.
    assert jnp.allclose(out, ref, rtol=5e-2, atol=5e-2), "mismatch vs reference"
    print("KERNEL_OK")
</pallas_src>

<mosaic_0001>
module attributes {stable_mosaic.version = 11 : i64} {
  func.func @lstm_clf_kernel(%arg0: memref<64x128xbf16, #tpu.memory_space<vmem>>, %arg1: memref<8x1xi32, #tpu.memory_space<vmem>>, %arg2: memref<128x512xbf16, #tpu.memory_space<vmem>>, %arg3: memref<128x512xbf16, #tpu.memory_space<vmem>>, %arg4: memref<1x512xf32, #tpu.memory_space<vmem>>, %arg5: memref<128x128xbf16, #tpu.memory_space<vmem>>, %arg6: memref<1x128xf32, #tpu.memory_space<vmem>>, %arg7: memref<8x128xf32, #tpu.memory_space<vmem>>, %arg8: memref<64x512xf32, #tpu.memory_space<vmem>>) attributes {dimension_semantics = [], scalar_prefetch = 0 : i64, scratch_operands = 1 : i64, tpu.core_type = #tpu.core_type<tc>} {
    %c0 = arith.constant 0 : index
    %c0_0 = arith.constant 0 : index
    %0 = vector.load %arg0[%c0, %c0_0] : memref<64x128xbf16, #tpu.memory_space<vmem>>, vector<64x128xbf16>
    %c0_1 = arith.constant 0 : index
    %c0_2 = arith.constant 0 : index
    %1 = vector.load %arg2[%c0_1, %c0_2] : memref<128x512xbf16, #tpu.memory_space<vmem>>, vector<128x512xbf16>
    %cst = arith.constant dense<0.000000e+00> : vector<64x512xf32>
    %2 = tpu.matmul %0, %1, %cst {dimension_numbers = #tpu.dot_dimension_numbers<[1], [0], [0], [1], [0, 0, 1, 1], [], []>} : vector<64x128xbf16>, vector<128x512xbf16>, vector<64x512xf32> -> vector<64x512xf32>
    %c0_3 = arith.constant 0 : index
    %c0_4 = arith.constant 0 : index
    %3 = vector.load %arg4[%c0_3, %c0_4] : memref<1x512xf32, #tpu.memory_space<vmem>>, vector<1x512xf32>
    %4 = vector.broadcast %3 : vector<1x512xf32> to vector<64x512xf32>
    %5 = arith.addf %2, %4 : vector<64x512xf32>
    %c0_5 = arith.constant 0 : index
    %c0_6 = arith.constant 0 : index
    %6 = vector.load %arg8[%c0_5, %c0_6] : memref<64x512xf32, #tpu.memory_space<vmem>>, vector<64x512xf32>
    tpu.vector_store %arg8[%c0_5, %c0_6], %5 {strides = array<i32>} : memref<64x512xf32, #tpu.memory_space<vmem>>, vector<64x512xf32>,
    %c0_7 = arith.constant 0 : index
    %c0_8 = arith.constant 0 : index
    %7 = vector.load %arg1[%c0_7, %c0_8] : memref<8x1xi32, #tpu.memory_space<vmem>>, vector<8x1xi32>
    %cst_9 = arith.constant 0.000000e+00 : f32
    %8 = vector.broadcast %cst_9 : f32 to vector<8x128xf32>
    %cst_10 = arith.constant 0.000000e+00 : f32
    %9 = vector.broadcast %cst_10 : f32 to vector<8x128xf32>
    %c0_11 = arith.constant 0 : index
    %c0_12 = arith.constant 0 : index
    %10 = vector.load %arg8[%c0_11, %c0_12] : memref<64x512xf32, #tpu.memory_space<vmem>>, vector<8x512xf32>
    %11 = arith.truncf %8 : vector<8x128xf32> to vector<8x128xbf16>
    %c0_13 = arith.constant 0 : index
    %c0_14 = arith.constant 0 : index
    %12 = vector.load %arg3[%c0_13, %c0_14] : memref<128x512xbf16, #tpu.memory_space<vmem>>, vector<128x512xbf16>
    %cst_15 = arith.constant dense<0.000000e+00> : vector<8x512xf32>
    %13 = tpu.matmul %11, %12, %cst_15 {dimension_numbers = #tpu.dot_dimension_numbers<[1], [0], [0], [1], [0, 0, 1, 1], [], []>} : vector<8x128xbf16>, vector<128x512xbf16>, vector<8x512xf32> -> vector<8x512xf32>
    %14 = arith.addf %10, %13 : vector<8x512xf32>
    %15 = vector.extract_strided_slice %14 {offsets = [0, 0], sizes = [8, 384], strides = [1, 1]} : vector<8x512xf32> to vector<8x384xf32>
    %16 = arith.negf %15 : vector<8x384xf32>
    %17 = math.exp %16 : vector<8x384xf32>
    %cst_16 = arith.constant 1.000000e+00 : f32
    %18 = vector.broadcast %cst_16 : f32 to vector<8x384xf32>
    %19 = arith.addf %18, %17 : vector<8x384xf32>
    %20 = arith.divf %18, %19 : vector<8x384xf32>
    %21 = vector.extract_strided_slice %20 {offsets = [0, 0], sizes = [8, 128], strides = [1, 1]} : vector<8x384xf32> to vector<8x128xf32>
    %22 = vector.extract_strided_slice %20 {offsets = [0, 128], sizes = [8, 128], strides = [1, 1]} : vector<8x384xf32> to vector<8x128xf32>
    %23 = vector.extract_strided_slice %20 {offsets = [0, 256], sizes = [8, 128], strides = [1, 1]} : vector<8x384xf32> to vector<8x128xf32>
    %24 = vector.extract_strided_slice %14 {offsets = [0, 384], sizes = [8, 128], strides = [1, 1]} : vector<8x512xf32> to vector<8x128xf32>
    %25 = math.tanh %24 : vector<8x128xf32>
    %26 = arith.mulf %22, %9 : vector<8x128xf32>
    %27 = arith.mulf %21, %25 : vector<8x128xf32>
    %28 = arith.addf %26, %27 : vector<8x128xf32>
    %29 = math.tanh %28 : vector<8x128xf32>
    %30 = arith.mulf %23, %29 : vector<8x128xf32>
    %c0_i32 = arith.constant 0 : i32
    %31 = vector.broadcast %c0_i32 : i32 to vector<8x1xi32>
    %32 = arith.cmpi sgt, %7, %31 : vector<8x1xi32>
    %33 = vector.shape_cast %32 : vector<8x1xi1> to vector<8x1xi1>
    %34 = vector.broadcast %33 : vector<8x1xi1> to vector<8x128xi1>
    %35 = arith.select %34, %30, %8 : vector<8x128xi1>, vector<8x128xf32>
    %36 = vector.shape_cast %32 : vector<8x1xi1> to vector<8x1xi1>
    %37 = vector.broadcast %36 : vector<8x1xi1> to vector<8x128xi1>
    %38 = arith.select %37, %28, %9 : vector<8x128xi1>, vector<8x128xf32>
    %c8 = arith.constant 8 : index
    %c0_17 = arith.constant 0 : index
    %39 = vector.load %arg8[%c8, %c0_17] : memref<64x512xf32, #tpu.memory_space<vmem>>, vector<8x512xf32>
    %40 = arith.truncf %35 : vector<8x128xf32> to vector<8x128xbf16>
    %c0_18 = arith.constant 0 : index
    %c0_19 = arith.constant 0 : index
    %41 = vector.load %arg3[%c0_18, %c0_19] : memref<128x512xbf16, #tpu.memory_space<vmem>>, vector<128x512xbf16>
    %cst_20 = arith.constant dense<0.000000e+00> : vector<8x512xf32>
    %42 = tpu.matmul %40, %41, %cst_20 {dimension_numbers = #tpu.dot_dimension_numbers<[1], [0], [0], [1], [0, 0, 1, 1], [], []>} : vector<8x128xbf16>, vector<128x512xbf16>, vector<8x512xf32> -> vector<8x512xf32>
    %43 = arith.addf %39, %42 : vector<8x512xf32>
    %44 = vector.extract_strided_slice %43 {offsets = [0, 0], sizes = [8, 384], strides = [1, 1]} : vector<8x512xf32> to vector<8x384xf32>
    %45 = arith.negf %44 : vector<8x384xf32>
    %46 = math.exp %45 : vector<8x384xf32>
    %cst_21 = arith.constant 1.000000e+00 : f32
    %47 = vector.broadcast %cst_21 : f32 to vector<8x384xf32>
    %48 = arith.addf %47, %46 : vector<8x384xf32>
    %49 = arith.divf %47, %48 : vector<8x384xf32>
    %50 = vector.extract_strided_slice %49 {offsets = [0, 0], sizes = [8, 128], strides = [1, 1]} : vector<8x384xf32> to vector<8x128xf32>
    %51 = vector.extract_strided_slice %49 {offsets = [0, 128], sizes = [8, 128], strides = [1, 1]} : vector<8x384xf32> to vector<8x128xf32>
    %52 = vector.extract_strided_slice %49 {offsets = [0, 256], sizes = [8, 128], strides = [1, 1]} : vector<8x384xf32> to vector<8x128xf32>
    %53 = vector.extract_strided_slice %43 {offsets = [0, 384], sizes = [8, 128], strides = [1, 1]} : vector<8x512xf32> to vector<8x128xf32>
    %54 = math.tanh %53 : vector<8x128xf32>
    %55 = arith.mulf %51, %38 : vector<8x128xf32>
    %56 = arith.mulf %50, %54 : vector<8x128xf32>
    %57 = arith.addf %55, %56 : vector<8x128xf32>
    %58 = math.tanh %57 : vector<8x128xf32>
    %59 = arith.mulf %52, %58 : vector<8x128xf32>
    %c1_i32 = arith.constant 1 : i32
    %60 = vector.broadcast %c1_i32 : i32 to vector<8x1xi32>
    %61 = arith.cmpi sgt, %7, %60 : vector<8x1xi32>
    %62 = vector.shape_cast %61 : vector<8x1xi1> to vector<8x1xi1>
    %63 = vector.broadcast %62 : vector<8x1xi1> to vector<8x128xi1>
    %64 = arith.select %63, %59, %35 : vector<8x128xi1>, vector<8x128xf32>
    %65 = vector.shape_cast %61 : vector<8x1xi1> to vector<8x1xi1>
    %66 = vector.broadcast %65 : vector<8x1xi1> to vector<8x128xi1>
    %67 = arith.select %66, %57, %38 : vector<8x128xi1>, vector<8x128xf32>
    %c16 = arith.constant 16 : index
    %c0_22 = arith.constant 0 : index
    %68 = vector.load %arg8[%c16, %c0_22] : memref<64x512xf32, #tpu.memory_space<vmem>>, vector<8x512xf32>
    %69 = arith.truncf %64 : vector<8x128xf32> to vector<8x128xbf16>
    %c0_23 = arith.constant 0 : index
    %c0_24 = arith.constant 0 : index
    %70 = vector.load %arg3[%c0_23, %c0_24] : memref<128x512xbf16, #tpu.memory_space<vmem>>, vector<128x512xbf16>
    %cst_25 = arith.constant dense<0.000000e+00> : vector<8x512xf32>
    %71 = tpu.matmul %69, %70, %cst_25 {dimension_numbers = #tpu.dot_dimension_numbers<[1], [0], [0], [1], [0, 0, 1, 1], [], []>} : vector<8x128xbf16>, vector<128x512xbf16>, vector<8x512xf32> -> vector<8x512xf32>
    %72 = arith.addf %68, %71 : vector<8x512xf32>
    %73 = vector.extract_strided_slice %72 {offsets = [0, 0], sizes = [8, 384], strides = [1, 1]} : vector<8x512xf32> to vector<8x384xf32>
    %74 = arith.negf %73 : vector<8x384xf32>
    %75 = math.exp %74 : vector<8x384xf32>
    %cst_26 = arith.constant 1.000000e+00 : f32
    %76 = vector.broadcast %cst_26 : f32 to vector<8x384xf32>
    %77 = arith.addf %76, %75 : vector<8x384xf32>
    %78 = arith.divf %76, %77 : vector<8x384xf32>
    %79 = vector.extract_strided_slice %78 {offsets = [0, 0], sizes = [8, 128], strides = [1, 1]} : vector<8x384xf32> to vector<8x128xf32>
    %80 = vector.extract_strided_slice %78 {offsets = [0, 128], sizes = [8, 128], strides = [1, 1]} : vector<8x384xf32> to vector<8x128xf32>
    %81 = vector.extract_strided_slice %78 {offsets = [0, 256], sizes = [8, 128], strides = [1, 1]} : vector<8x384xf32> to vector<8x128xf32>
    %82 = vector.extract_strided_slice %72 {offsets = [0, 384], sizes = [8, 128], strides = [1, 1]} : vector<8x512xf32> to vector<8x128xf32>
    %83 = math.tanh %82 : vector<8x128xf32>
    %84 = arith.mulf %80, %67 : vector<8x128xf32>
    %85 = arith.mulf %79, %83 : vector<8x128xf32>
    %86 = arith.addf %84, %85 : vector<8x128xf32>
    %87 = math.tanh %86 : vector<8x128xf32>
    %88 = arith.mulf %81, %87 : vector<8x128xf32>
    %c2_i32 = arith.constant 2 : i32
    %89 = vector.broadcast %c2_i32 : i32 to vector<8x1xi32>
    %90 = arith.cmpi sgt, %7, %89 : vector<8x1xi32>
    %91 = vector.shape_cast %90 : vector<8x1xi1> to vector<8x1xi1>
    %92 = vector.broadcast %91 : vector<8x1xi1> to vector<8x128xi1>
    %93 = arith.select %92, %88, %64 : vector<8x128xi1>, vector<8x128xf32>
    %94 = vector.shape_cast %90 : vector<8x1xi1> to vector<8x1xi1>
    %95 = vector.broadcast %94 : vector<8x1xi1> to vector<8x128xi1>
    %96 = arith.select %95, %86, %67 : vector<8x128xi1>, vector<8x128xf32>
    %c24 = arith.constant 24 : index
    %c0_27 = arith.constant 0 : index
    %97 = vector.load %arg8[%c24, %c0_27] : memref<64x512xf32, #tpu.memory_space<vmem>>, vector<8x512xf32>
    %98 = arith.truncf %93 : vector<8x128xf32> to vector<8x128xbf16>
    %c0_28 = arith.constant 0 : index
    %c0_29 = arith.constant 0 : index
    %99 = vector.load %arg3[%c0_28, %c0_29] : memref<128x512xbf16, #tpu.memory_space<vmem>>, vector<128x512xbf16>
    %cst_30 = arith.constant dense<0.000000e+00> : vector<8x512xf32>
    %100 = tpu.matmul %98, %99, %cst_30 {dimension_numbers = #tpu.dot_dimension_numbers<[1], [0], [0], [1], [0, 0, 1, 1], [], []>} : vector<8x128xbf16>, vector<128x512xbf16>, vector<8x512xf32> -> vector<8x512xf32>
    %101 = arith.addf %97, %100 : vector<8x512xf32>
    %102 = vector.extract_strided_slice %101 {offsets = [0, 0], sizes = [8, 384], strides = [1, 1]} : vector<8x512xf32> to vector<8x384xf32>
    %103 = arith.negf %102 : vector<8x384xf32>
    %104 = math.exp %103 : vector<8x384xf32>
    %cst_31 = arith.constant 1.000000e+00 : f32
    %105 = vector.broadcast %cst_31 : f32 to vector<8x384xf32>
    %106 = arith.addf %105, %104 : vector<8x384xf32>
    %107 = arith.divf %105, %106 : vector<8x384xf32>
    %108 = vector.extract_strided_slice %107 {offsets = [0, 0], sizes = [8, 128], strides = [1, 1]} : vector<8x384xf32> to vector<8x128xf32>
    %109 = vector.extract_strided_slice %107 {offsets = [0, 128], sizes = [8, 128], strides = [1, 1]} : vector<8x384xf32> to vector<8x128xf32>
    %110 = vector.extract_strided_slice %107 {offsets = [0, 256], sizes = [8, 128], strides = [1, 1]} : vector<8x384xf32> to vector<8x128xf32>
    %111 = vector.extract_strided_slice %101 {offsets = [0, 384], sizes = [8, 128], strides = [1, 1]} : vector<8x512xf32> to vector<8x128xf32>
    %112 = math.tanh %111 : vector<8x128xf32>
    %113 = arith.mulf %109, %96 : vector<8x128xf32>
    %114 = arith.mulf %108, %112 : vector<8x128xf32>
    %115 = arith.addf %113, %114 : vector<8x128xf32>
    %116 = math.tanh %115 : vector<8x128xf32>
    %117 = arith.mulf %110, %116 : vector<8x128xf32>
    %c3_i32 = arith.constant 3 : i32
    %118 = vector.broadcast %c3_i32 : i32 to vector<8x1xi32>
    %119 = arith.cmpi sgt, %7, %118 : vector<8x1xi32>
    %120 = vector.shape_cast %119 : vector<8x1xi1> to vector<8x1xi1>
    %121 = vector.broadcast %120 : vector<8x1xi1> to vector<8x128xi1>
    %122 = arith.select %121, %117, %93 : vector<8x128xi1>, vector<8x128xf32>
    %123 = vector.shape_cast %119 : vector<8x1xi1> to vector<8x1xi1>
    %124 = vector.broadcast %123 : vector<8x1xi1> to vector<8x128xi1>
    %125 = arith.select %124, %115, %96 : vector<8x128xi1>, vector<8x128xf32>
    %c32 = arith.constant 32 : index
    %c0_32 = arith.constant 0 : index
    %126 = vector.load %arg8[%c32, %c0_32] : memref<64x512xf32, #tpu.memory_space<vmem>>, vector<8x512xf32>
    %127 = arith.truncf %122 : vector<8x128xf32> to vector<8x128xbf16>
    %c0_33 = arith.constant 0 : index
    %c0_34 = arith.constant 0 : index
    %128 = vector.load %arg3[%c0_33, %c0_34] : memref<128x512xbf16, #tpu.memory_space<vmem>>, vector<128x512xbf16>
    %cst_35 = arith.constant dense<0.000000e+00> : vector<8x512xf32>
    %129 = tpu.matmul %127, %128, %cst_35 {dimension_numbers = #tpu.dot_dimension_numbers<[1], [0], [0], [1], [0, 0, 1, 1], [], []>} : vector<8x128xbf16>, vector<128x512xbf16>, vector<8x512xf32> -> vector<8x512xf32>
    %130 = arith.addf %126, %129 : vector<8x512xf32>
    %131 = vector.extract_strided_slice %130 {offsets = [0, 0], sizes = [8, 384], strides = [1, 1]} : vector<8x512xf32> to vector<8x384xf32>
    %132 = arith.negf %131 : vector<8x384xf32>
    %133 = math.exp %132 : vector<8x384xf32>
    %cst_36 = arith.constant 1.000000e+00 : f32
    %134 = vector.broadcast %cst_36 : f32 to vector<8x384xf32>
    %135 = arith.addf %134, %133 : vector<8x384xf32>
    %136 = arith.divf %134, %135 : vector<8x384xf32>
    %137 = vector.extract_strided_slice %136 {offsets = [0, 0], sizes = [8, 128], strides = [1, 1]} : vector<8x384xf32> to vector<8x128xf32>
    %138 = vector.extract_strided_slice %136 {offsets = [0, 128], sizes = [8, 128], strides = [1, 1]} : vector<8x384xf32> to vector<8x128xf32>
    %139 = vector.extract_strided_slice %136 {offsets = [0, 256], sizes = [8, 128], strides = [1, 1]} : vector<8x384xf32> to vector<8x128xf32>
    %140 = vector.extract_strided_slice %130 {offsets = [0, 384], sizes = [8, 128], strides = [1, 1]} : vector<8x512xf32> to vector<8x128xf32>
    %141 = math.tanh %140 : vector<8x128xf32>
    %142 = arith.mulf %138, %125 : vector<8x128xf32>
    %143 = arith.mulf %137, %141 : vector<8x128xf32>
    %144 = arith.addf %142, %143 : vector<8x128xf32>
    %145 = math.tanh %144 : vector<8x128xf32>
    %146 = arith.mulf %139, %145 : vector<8x128xf32>
    %c4_i32 = arith.constant 4 : i32
    %147 = vector.broadcast %c4_i32 : i32 to vector<8x1xi32>
    %148 = arith.cmpi sgt, %7, %147 : vector<8x1xi32>
    %149 = vector.shape_cast %148 : vector<8x1xi1> to vector<8x1xi1>
    %150 = vector.broadcast %149 : vector<8x1xi1> to vector<8x128xi1>
    %151 = arith.select %150, %146, %122 : vector<8x128xi1>, vector<8x128xf32>
    %152 = vector.shape_cast %148 : vector<8x1xi1> to vector<8x1xi1>
    %153 = vector.broadcast %152 : vector<8x1xi1> to vector<8x128xi1>
    %154 = arith.select %153, %144, %125 : vector<8x128xi1>, vector<8x128xf32>
    %c40 = arith.constant 40 : index
    %c0_37 = arith.constant 0 : index
    %155 = vector.load %arg8[%c40, %c0_37] : memref<64x512xf32, #tpu.memory_space<vmem>>, vector<8x512xf32>
    %156 = arith.truncf %151 : vector<8x128xf32> to vector<8x128xbf16>
    %c0_38 = arith.constant 0 : index
    %c0_39 = arith.constant 0 : index
    %157 = vector.load %arg3[%c0_38, %c0_39] : memref<128x512xbf16, #tpu.memory_space<vmem>>, vector<128x512xbf16>
    %cst_40 = arith.constant dense<0.000000e+00> : vector<8x512xf32>
    %158 = tpu.matmul %156, %157, %cst_40 {dimension_numbers = #tpu.dot_dimension_numbers<[1], [0], [0], [1], [0, 0, 1, 1], [], []>} : vector<8x128xbf16>, vector<128x512xbf16>, vector<8x512xf32> -> vector<8x512xf32>
    %159 = arith.addf %155, %158 : vector<8x512xf32>
    %160 = vector.extract_strided_slice %159 {offsets = [0, 0], sizes = [8, 384], strides = [1, 1]} : vector<8x512xf32> to vector<8x384xf32>
    %161 = arith.negf %160 : vector<8x384xf32>
    %162 = math.exp %161 : vector<8x384xf32>
    %cst_41 = arith.constant 1.000000e+00 : f32
    %163 = vector.broadcast %cst_41 : f32 to vector<8x384xf32>
    %164 = arith.addf %163, %162 : vector<8x384xf32>
    %165 = arith.divf %163, %164 : vector<8x384xf32>
    %166 = vector.extract_strided_slice %165 {offsets = [0, 0], sizes = [8, 128], strides = [1, 1]} : vector<8x384xf32> to vector<8x128xf32>
    %167 = vector.extract_strided_slice %165 {offsets = [0, 128], sizes = [8, 128], strides = [1, 1]} : vector<8x384xf32> to vector<8x128xf32>
    %168 = vector.extract_strided_slice %165 {offsets = [0, 256], sizes = [8, 128], strides = [1, 1]} : vector<8x384xf32> to vector<8x128xf32>
    %169 = vector.extract_strided_slice %159 {offsets = [0, 384], sizes = [8, 128], strides = [1, 1]} : vector<8x512xf32> to vector<8x128xf32>
    %170 = math.tanh %169 : vector<8x128xf32>
    %171 = arith.mulf %167, %154 : vector<8x128xf32>
    %172 = arith.mulf %166, %170 : vector<8x128xf32>
    %173 = arith.addf %171, %172 : vector<8x128xf32>
    %174 = math.tanh %173 : vector<8x128xf32>
    %175 = arith.mulf %168, %174 : vector<8x128xf32>
    %c5_i32 = arith.constant 5 : i32
    %176 = vector.broadcast %c5_i32 : i32 to vector<8x1xi32>
    %177 = arith.cmpi sgt, %7, %176 : vector<8x1xi32>
    %178 = vector.shape_cast %177 : vector<8x1xi1> to vector<8x1xi1>
    %179 = vector.broadcast %178 : vector<8x1xi1> to vector<8x128xi1>
    %180 = arith.select %179, %175, %151 : vector<8x128xi1>, vector<8x128xf32>
    %181 = vector.shape_cast %177 : vector<8x1xi1> to vector<8x1xi1>
    %182 = vector.broadcast %181 : vector<8x1xi1> to vector<8x128xi1>
    %183 = arith.select %182, %173, %154 : vector<8x128xi1>, vector<8x128xf32>
    %c48 = arith.constant 48 : index
    %c0_42 = arith.constant 0 : index
    %184 = vector.load %arg8[%c48, %c0_42] : memref<64x512xf32, #tpu.memory_space<vmem>>, vector<8x512xf32>
    %185 = arith.truncf %180 : vector<8x128xf32> to vector<8x128xbf16>
    %c0_43 = arith.constant 0 : index
    %c0_44 = arith.constant 0 : index
    %186 = vector.load %arg3[%c0_43, %c0_44] : memref<128x512xbf16, #tpu.memory_space<vmem>>, vector<128x512xbf16>
    %cst_45 = arith.constant dense<0.000000e+00> : vector<8x512xf32>
    %187 = tpu.matmul %185, %186, %cst_45 {dimension_numbers = #tpu.dot_dimension_numbers<[1], [0], [0], [1], [0, 0, 1, 1], [], []>} : vector<8x128xbf16>, vector<128x512xbf16>, vector<8x512xf32> -> vector<8x512xf32>
    %188 = arith.addf %184, %187 : vector<8x512xf32>
    %189 = vector.extract_strided_slice %188 {offsets = [0, 0], sizes = [8, 384], strides = [1, 1]} : vector<8x512xf32> to vector<8x384xf32>
    %190 = arith.negf %189 : vector<8x384xf32>
    %191 = math.exp %190 : vector<8x384xf32>
    %cst_46 = arith.constant 1.000000e+00 : f32
    %192 = vector.broadcast %cst_46 : f32 to vector<8x384xf32>
    %193 = arith.addf %192, %191 : vector<8x384xf32>
    %194 = arith.divf %192, %193 : vector<8x384xf32>
    %195 = vector.extract_strided_slice %194 {offsets = [0, 0], sizes = [8, 128], strides = [1, 1]} : vector<8x384xf32> to vector<8x128xf32>
    %196 = vector.extract_strided_slice %194 {offsets = [0, 128], sizes = [8, 128], strides = [1, 1]} : vector<8x384xf32> to vector<8x128xf32>
    %197 = vector.extract_strided_slice %194 {offsets = [0, 256], sizes = [8, 128], strides = [1, 1]} : vector<8x384xf32> to vector<8x128xf32>
    %198 = vector.extract_strided_slice %188 {offsets = [0, 384], sizes = [8, 128], strides = [1, 1]} : vector<8x512xf32> to vector<8x128xf32>
    %199 = math.tanh %198 : vector<8x128xf32>
    %200 = arith.mulf %196, %183 : vector<8x128xf32>
    %201 = arith.mulf %195, %199 : vector<8x128xf32>
    %202 = arith.addf %200, %201 : vector<8x128xf32>
    %203 = math.tanh %202 : vector<8x128xf32>
    %204 = arith.mulf %197, %203 : vector<8x128xf32>
    %c6_i32 = arith.constant 6 : i32
    %205 = vector.broadcast %c6_i32 : i32 to vector<8x1xi32>
    %206 = arith.cmpi sgt, %7, %205 : vector<8x1xi32>
    %207 = vector.shape_cast %206 : vector<8x1xi1> to vector<8x1xi1>
    %208 = vector.broadcast %207 : vector<8x1xi1> to vector<8x128xi1>
    %209 = arith.select %208, %204, %180 : vector<8x128xi1>, vector<8x128xf32>
    %210 = vector.shape_cast %206 : vector<8x1xi1> to vector<8x1xi1>
    %211 = vector.broadcast %210 : vector<8x1xi1> to vector<8x128xi1>
    %212 = arith.select %211, %202, %183 : vector<8x128xi1>, vector<8x128xf32>
    %c56 = arith.constant 56 : index
    %c0_47 = arith.constant 0 : index
    %213 = vector.load %arg8[%c56, %c0_47] : memref<64x512xf32, #tpu.memory_space<vmem>>, vector<8x512xf32>
    %214 = arith.truncf %209 : vector<8x128xf32> to vector<8x128xbf16>
    %c0_48 = arith.constant 0 : index
    %c0_49 = arith.constant 0 : index
    %215 = vector.load %arg3[%c0_48, %c0_49] : memref<128x512xbf16, #tpu.memory_space<vmem>>, vector<128x512xbf16>
    %cst_50 = arith.constant dense<0.000000e+00> : vector<8x512xf32>
    %216 = tpu.matmul %214, %215, %cst_50 {dimension_numbers = #tpu.dot_dimension_numbers<[1], [0], [0], [1], [0, 0, 1, 1], [], []>} : vector<8x128xbf16>, vector<128x512xbf16>, vector<8x512xf32> -> vector<8x512xf32>
    %217 = arith.addf %213, %216 : vector<8x512xf32>
    %218 = vector.extract_strided_slice %217 {offsets = [0, 0], sizes = [8, 384], strides = [1, 1]} : vector<8x512xf32> to vector<8x384xf32>
    %219 = arith.negf %218 : vector<8x384xf32>
    %220 = math.exp %219 : vector<8x384xf32>
    %cst_51 = arith.constant 1.000000e+00 : f32
    %221 = vector.broadcast %cst_51 : f32 to vector<8x384xf32>
    %222 = arith.addf %221, %220 : vector<8x384xf32>
    %223 = arith.divf %221, %222 : vector<8x384xf32>
    %224 = vector.extract_strided_slice %223 {offsets = [0, 0], sizes = [8, 128], strides = [1, 1]} : vector<8x384xf32> to vector<8x128xf32>
    %225 = vector.extract_strided_slice %223 {offsets = [0, 128], sizes = [8, 128], strides = [1, 1]} : vector<8x384xf32> to vector<8x128xf32>
    %226 = vector.extract_strided_slice %223 {offsets = [0, 256], sizes = [8, 128], strides = [1, 1]} : vector<8x384xf32> to vector<8x128xf32>
    %227 = vector.extract_strided_slice %217 {offsets = [0, 384], sizes = [8, 128], strides = [1, 1]} : vector<8x512xf32> to vector<8x128xf32>
    %228 = math.tanh %227 : vector<8x128xf32>
    %229 = arith.mulf %225, %212 : vector<8x128xf32>
    %230 = arith.mulf %224, %228 : vector<8x128xf32>
    %231 = arith.addf %229, %230 : vector<8x128xf32>
    %232 = math.tanh %231 : vector<8x128xf32>
    %233 = arith.mulf %226, %232 : vector<8x128xf32>
    %c7_i32 = arith.constant 7 : i32
    %234 = vector.broadcast %c7_i32 : i32 to vector<8x1xi32>
    %235 = arith.cmpi sgt, %7, %234 : vector<8x1xi32>
    %236 = vector.shape_cast %235 : vector<8x1xi1> to vector<8x1xi1>
    %237 = vector.broadcast %236 : vector<8x1xi1> to vector<8x128xi1>
    %238 = arith.select %237, %233, %209 : vector<8x128xi1>, vector<8x128xf32>
    %239 = arith.truncf %238 : vector<8x128xf32> to vector<8x128xbf16>
    %c0_52 = arith.constant 0 : index
    %c0_53 = arith.constant 0 : index
    %240 = vector.load %arg5[%c0_52, %c0_53] : memref<128x128xbf16, #tpu.memory_space<vmem>>, vector<128x128xbf16>
    %cst_54 = arith.constant dense<0.000000e+00> : vector<8x128xf32>
    %241 = tpu.matmul %239, %240, %cst_54 {dimension_numbers = #tpu.dot_dimension_numbers<[1], [0], [0], [1], [0, 0, 1, 1], [], []>} : vector<8x128xbf16>, vector<128x128xbf16>, vector<8x128xf32> -> vector<8x128xf32>
    %c0_55 = arith.constant 0 : index
    %c0_56 = arith.constant 0 : index
    %242 = vector.load %arg6[%c0_55, %c0_56] : memref<1x128xf32, #tpu.memory_space<vmem>>, vector<1x128xf32>
    %243 = vector.broadcast %242 : vector<1x128xf32> to vector<8x128xf32>
    %244 = arith.addf %241, %243 : vector<8x128xf32>
    %c0_57 = arith.constant 0 : index
    %c0_58 = arith.constant 0 : index
    %245 = vector.load %arg7[%c0_57, %c0_58] : memref<8x128xf32, #tpu.memory_space<vmem>>, vector<8x128xf32>
    tpu.vector_store %arg7[%c0_57, %c0_58], %244 {strides = array<i32>} : memref<8x128xf32, #tpu.memory_space<vmem>>, vector<8x128xf32>,
    return
  }
}

</mosaic_0001>

<llo_original>
// kernel: _lambda_.1
$region0: #{_lambda_.1}
  #allocation0 [shape = 'u32[]', space=smem, size = 0x4, offset = 0x4, fixed_abs, tag = 'smem constant byte address 0x4 - core index']
  #allocation1 [shape = 'u32[72,128]{1,0:T(1,128)}', space=vmem, size = 0x9000, scoped, tag = 'internal scratch']
  #allocation2 [shape = 'f32[64,512]{1,0:T(8,128)}', space=vmem, size = 0x20000, scoped, tag = 'scratch operand']
  %s0 = inlined_call_operand.vmem [shape: bf16[64,128], index: 0, kind: input, shape index: {}]
  %s1 = inlined_call_operand.vmem [shape: s32[8,1], index: 1, kind: input, shape index: {}]
  %s2 = inlined_call_operand.hbm [shape: bf16[128,512], index: 2, kind: input, shape index: {}]
  %s3 = inlined_call_operand.hbm [shape: bf16[128,512], index: 3, kind: input, shape index: {}]
  %s4 = inlined_call_operand.vmem [shape: f32[1,512], index: 4, kind: input, shape index: {}]
  %s5 = inlined_call_operand.vmem [shape: bf16[128,128], index: 5, kind: input, shape index: {}]
  %s6 = inlined_call_operand.vmem [shape: f32[1,128], index: 6, kind: input, shape index: {}]
  %s7 = inlined_call_operand.vmem [shape: f32[8,128], index: 7, kind: output, shape index: {}]
  %s8 = sld [smem:[#allocation0]]
  $region46: #{_lambda_.1} parent=0
    _
  %s10 = ssub.s32 1, %s8
  %s11 = scalar_select 0, %s10, %s8
  $region1: #{_lambda_.1} parent=0
    #allocation3 [shape = 'u8[131072]{0}', space=vmem, size = 0x20000, scoped, tag = 'input window, operand 2, single buffered']
    #allocation4 [shape = 's32[1]{0}', space=sflag, size = 0x4, scoped, tag = 'scoped memory for _lambda_.1']
    #allocation5 [shape = 'u8[131072]{0}', space=vmem, size = 0x20000, scoped, tag = 'input window, operand 3, single buffered']
    #allocation6 [shape = 's32[1]{0}', space=sflag, size = 0x4, scoped, tag = 'scoped memory for _lambda_.1']
    %12 = vsyncpa [#allocation4], 0
    %13 = vsyncpa [#allocation6], 0
    // Predicated region
    $region2: #{_lambda_.1} parent=1 // pred_check
      _
    $region3: #{_lambda_.1} parent=1 // pred_check_branch
      %15 = sbr.rel (0) target = $region5
    $region4: #{_lambda_.1} parent=1 // pred_region
      _
    $region5: #{_lambda_.1} parent=1 // pred_fallthru
      _
    // Predicated region
    $region6: #{_lambda_.1} parent=1 // pred_check
      _
    $region7: #{_lambda_.1} parent=1 // pred_check_branch
      %17 = sbr.rel (0) target = $region9
    $region8: #{_lambda_.1} parent=1 // pred_region
      _
    $region9: #{_lambda_.1} parent=1 // pred_fallthru
      _
    // Predicated region
    $region10: #{_lambda_.1} parent=1 // pred_check
      _
    $region11: #{_lambda_.1} parent=1 // pred_check_branch
      %19 = sbr.rel (0) target = $region13
    $region12: #{_lambda_.1} parent=1 // pred_region
      %21 = vsyncadd [#allocation4], 0
      %s22 = sshll.u32 %s2, 4
      %s23 = int_to_ptr.hbm [resolvable:$true] %s22
      %s24 = sshll.u32 [#allocation3], 4
      %s25 = int_to_ptr.vmem [resolvable:$true] %s24
      %30 = dma.hbm_to_vmem [thread:$0]  %s23, 4096, %s25, [#allocation4], 256, 256, 16
    $region13: #{_lambda_.1} parent=1 // pred_fallthru
      _
    // Predicated region
    $region14: #{_lambda_.1} parent=1 // pred_check
      _
    $region15: #{_lambda_.1} parent=1 // pred_check_branch
      %32 = sbr.rel (0) target = $region17
    $region16: #{_lambda_.1} parent=1 // pred_region
      %34 = vsyncadd [#allocation6], 0
      %s35 = sshll.u32 %s3, 4
      %s36 = int_to_ptr.hbm [resolvable:$true] %s35
      %s37 = sshll.u32 [#allocation5], 4
      %s38 = int_to_ptr.vmem [resolvable:$true] %s37
      %43 = dma.hbm_to_vmem [thread:$0]  %s36, 4096, %s38, [#allocation6], 256, 256, 16
    $region17: #{_lambda_.1} parent=1 // pred_fallthru
      _
    // Predicated region
    $region18: #{_lambda_.1} parent=1 // pred_check
      _
    $region19: #{_lambda_.1} parent=1 // pred_check_branch
      %45 = sbr.rel (0) target = $region21
    $region20: #{_lambda_.1} parent=1 // pred_region
      _
    $region21: #{_lambda_.1} parent=1 // pred_fallthru
      _
    // Predicated region
    $region22: #{_lambda_.1} parent=1 // pred_check
      _
    $region23: #{_lambda_.1} parent=1 // pred_check_branch
      %47 = sbr.rel (0) target = $region25
    $region24: #{_lambda_.1} parent=1 // pred_region
      _
    $region25: #{_lambda_.1} parent=1 // pred_fallthru
      _
    // Predicated region
    $region26: #{_lambda_.1} parent=1 // pred_check
      _
    $region27: #{_lambda_.1} parent=1 // pred_check_branch
      %49 = sbr.rel (0) target = $region29
    $region28: #{_lambda_.1} parent=1 // pred_region
      _
    $region29: #{_lambda_.1} parent=1 // pred_fallthru
      _
    // Predicated region
    $region30: #{_lambda_.1} parent=1 // pred_check
      _
    $region31: #{_lambda_.1} parent=1 // pred_check_branch
      %51 = sbr.rel (0) target = $region33
    $region32: #{_lambda_.1} parent=1 // pred_region
      %53 = dma.done [#allocation4], 4096
    $region33: #{_lambda_.1} parent=1 // pred_fallthru
      _
    // Predicated region
    $region34: #{_lambda_.1} parent=1 // pred_check
      _
    $region35: #{_lambda_.1} parent=1 // pred_check_branch
      %55 = sbr.rel (0) target = $region37
    $region36: #{_lambda_.1} parent=1 // pred_region
      %57 = dma.done [#allocation6], 4096
    $region37: #{_lambda_.1} parent=1 // pred_fallthru
      _
    %v59 = vld [vmem:[%s0] sm:$0xf]
    %v60 = vld [vmem:[%s0 + $0x4] sm:$0xf]
    %v61 = vld [vmem:[%s0 + $0x8] sm:$0xf]
    %v62 = vld [vmem:[%s0 + $0xc] sm:$0xf]
    %v63 = vld [vmem:[%s0 + $0x10] sm:$0xf]
    %v64 = vld [vmem:[%s0 + $0x14] sm:$0xf]
    %v65 = vld [vmem:[%s0 + $0x18] sm:$0xf]
    %v66 = vld [vmem:[%s0 + $0x1c] sm:$0xf]
    %v67 = vld [vmem:[#allocation3] sm:$0xff]
    %v68 = vld [vmem:[#allocation3 + $0x8] sm:$0xff]
    %v69 = vld [vmem:[#allocation3 + $0x10] sm:$0xff]
    %v70 = vld [vmem:[#allocation3 + $0x18] sm:$0xff]
    %v71 = vld [vmem:[#allocation3 + $0x20] sm:$0xff]
    %v72 = vld [vmem:[#allocation3 + $0x28] sm:$0xff]
    %v73 = vld [vmem:[#allocation3 + $0x30] sm:$0xff]
    %v74 = vld [vmem:[#allocation3 + $0x38] sm:$0xff]
    %v75 = vld [vmem:[#allocation3 + $0x40] sm:$0xff]
    %v76 = vld [vmem:[#allocation3 + $0x48] sm:$0xff]
    %v77 = vld [vmem:[#allocation3 + $0x50] sm:$0xff]
    %v78 = vld [vmem:[#allocation3 + $0x58] sm:$0xff]
    %v79 = vld [vmem:[#allocation3 + $0x60] sm:$0xff]
    %v80 = vld [vmem:[#allocation3 + $0x68] sm:$0xff]
    %v81 = vld [vmem:[#allocation3 + $0x70] sm:$0xff]
    %v82 = vld [vmem:[#allocation3 + $0x78] sm:$0xff]
    %v83 = vld [vmem:[#allocation3 + $0x80] sm:$0xff]
    %v84 = vld [vmem:[#allocation3 + $0x88] sm:$0xff]
    %v85 = vld [vmem:[#allocation3 + $0x90] sm:$0xff]
    %v86 = vld [vmem:[#allocation3 + $0x98] sm:$0xff]
    %v87 = vld [vmem:[#allocation3 + $0xa0] sm:$0xff]
    %v88 = vld [vmem:[#allocation3 + $0xa8] sm:$0xff]
    %v89 = vld [vmem:[#allocation3 + $0xb0] sm:$0xff]
    %v90 = vld [vmem:[#allocation3 + $0xb8] sm:$0xff]
    %v91 = vld [vmem:[#allocation3 + $0xc0] sm:$0xff]
    %v92 = vld [vmem:[#allocation3 + $0xc8] sm:$0xff]
    %v93 = vld [vmem:[#allocation3 + $0xd0] sm:$0xff]
    %v94 = vld [vmem:[#allocation3 + $0xd8] sm:$0xff]
    %v95 = vld [vmem:[#allocation3 + $0xe0] sm:$0xff]
    %v96 = vld [vmem:[#allocation3 + $0xe8] sm:$0xff]
    %v97 = vld [vmem:[#allocation3 + $0xf0] sm:$0xff]
    %v98 = vld [vmem:[#allocation3 + $0xf8] sm:$0xff]
    %v99 = vld [vmem:[%s4] sm:$0xf]
    %v101 = vperm.slane %v99, 0
    %v102 = vperm.slane %v99, 1
    %v103 = vperm.slane %v99, 2
    %v104 = vperm.slane %v99, 3
    %v117 = vunpack.c.l.b16 %v59
    %v118 = vunpack.c.l.b16 %v60
    %v119 = vunpack.c.l.b16 %v61
    %v120 = vunpack.c.l.b16 %v62
    %v121 = vunpack.c.l.b16 %v63
    %v122 = vunpack.c.l.b16 %v64
    %v123 = vunpack.c.l.b16 %v65
    %v124 = vunpack.c.l.b16 %v66
    %v125 = vpack.c.b16 %v118, %v117
    %v126 = vpack.c.b16 %v120, %v119
    %v127 = vpack.c.b16 %v122, %v121
    %v128 = vpack.c.b16 %v124, %v123
    %v165 = vunpack.c.l.b16 %v67
    %v166 = vunpack.c.h.b16 %v67
    %v167 = vunpack.c.l.b16 %v68
    %v168 = vunpack.c.h.b16 %v68
    %v169 = vunpack.c.l.b16 %v69
    %v170 = vunpack.c.h.b16 %v69
    %v171 = vunpack.c.l.b16 %v70
    %v172 = vunpack.c.h.b16 %v70
    %v173 = vunpack.c.l.b16 %v71
    %v174 = vunpack.c.h.b16 %v71
    %v175 = vunpack.c.l.b16 %v72
    %v176 = vunpack.c.h.b16 %v72
    %v177 = vunpack.c.l.b16 %v73
    %v178 = vunpack.c.h.b16 %v73
    %v179 = vunpack.c.l.b16 %v74
    %v180 = vunpack.c.h.b16 %v74
    %v181 = vunpack.c.l.b16 %v75
    %v182 = vunpack.c.h.b16 %v75
    %v183 = vunpack.c.l.b16 %v76
    %v184 = vunpack.c.h.b16 %v76
    %v185 = vunpack.c.l.b16 %v77
    %v186 = vunpack.c.h.b16 %v77
    %v187 = vunpack.c.l.b16 %v78
    %v188 = vunpack.c.h.b16 %v78
    %v189 = vunpack.c.l.b16 %v79
    %v190 = vunpack.c.h.b16 %v79
    %v191 = vunpack.c.l.b16 %v80
    %v192 = vunpack.c.h.b16 %v80
    %v193 = vunpack.c.l.b16 %v81
    %v194 = vunpack.c.h.b16 %v81
    %v195 = vunpack.c.l.b16 %v82
    %v196 = vunpack.c.h.b16 %v82
    %v197 = vunpack.c.l.b16 %v83
    %v198 = vunpack.c.h.b16 %v83
    %v199 = vunpack.c.l.b16 %v84
    %v200 = vunpack.c.h.b16 %v84
    %v201 = vunpack.c.l.b16 %v85
    %v202 = vunpack.c.h.b16 %v85
    %v203 = vunpack.c.l.b16 %v86
    %v204 = vunpack.c.h.b16 %v86
    %v205 = vunpack.c.l.b16 %v87
    %v206 = vunpack.c.h.b16 %v87
    %v207 = vunpack.c.l.b16 %v88
    %v208 = vunpack.c.h.b16 %v88
    %v209 = vunpack.c.l.b16 %v89
    %v210 = vunpack.c.h.b16 %v89
    %v211 = vunpack.c.l.b16 %v90
    %v212 = vunpack.c.h.b16 %v90
    %v213 = vunpack.c.l.b16 %v91
    %v214 = vunpack.c.h.b16 %v91
    %v215 = vunpack.c.l.b16 %v92
    %v216 = vunpack.c.h.b16 %v92
    %v217 = vunpack.c.l.b16 %v93
    %v218 = vunpack.c.h.b16 %v93
    %v219 = vunpack.c.l.b16 %v94
    %v220 = vunpack.c.h.b16 %v94
    %v221 = vunpack.c.l.b16 %v95
    %v222 = vunpack.c.h.b16 %v95
    %v223 = vunpack.c.l.b16 %v96
    %v224 = vunpack.c.h.b16 %v96
    %v225 = vunpack.c.l.b16 %v97
    %v226 = vunpack.c.h.b16 %v97
    %v227 = vunpack.c.l.b16 %v98
    %v228 = vunpack.c.h.b16 %v98
    %v229 = vpack.c.b16 %v169, %v165
    %v230 = vpack.c.b16 %v170, %v166
    %v231 = vpack.c.b16 %v171, %v167
    %v232 = vpack.c.b16 %v172, %v168
    %v233 = vpack.c.b16 %v177, %v173
    %v234 = vpack.c.b16 %v178, %v174
    %v235 = vpack.c.b16 %v179, %v175
    %v236 = vpack.c.b16 %v180, %v176
    %v237 = vpack.c.b16 %v185, %v181
    %v238 = vpack.c.b16 %v186, %v182
    %v239 = vpack.c.b16 %v187, %v183
    %v240 = vpack.c.b16 %v188, %v184
    %v241 = vpack.c.b16 %v193, %v189
    %v242 = vpack.c.b16 %v194, %v190
    %v243 = vpack.c.b16 %v195, %v191
    %v244 = vpack.c.b16 %v196, %v192
    %v245 = vpack.c.b16 %v201, %v197
    %v246 = vpack.c.b16 %v202, %v198
    %v247 = vpack.c.b16 %v203, %v199
    %v248 = vpack.c.b16 %v204, %v200
    %v249 = vpack.c.b16 %v209, %v205
    %v250 = vpack.c.b16 %v210, %v206
    %v251 = vpack.c.b16 %v211, %v207
    %v252 = vpack.c.b16 %v212, %v208
    %v253 = vpack.c.b16 %v217, %v213
    %v254 = vpack.c.b16 %v218, %v214
    %v255 = vpack.c.b16 %v219, %v215
    %v256 = vpack.c.b16 %v220, %v216
    %v257 = vpack.c.b16 %v225, %v221
    %v258 = vpack.c.b16 %v226, %v222
    %v259 = vpack.c.b16 %v227, %v223
    %v260 = vpack.c.b16 %v228, %v224
    %293 = vmatpush.bf16.msra.mxu0 %v257
    %294 = vmatpush.bf16.msra.mxu0 %v253
    %295 = vmatpush.bf16.msra.mxu0 %v249
    %296 = vmatpush.bf16.msra.mxu0 %v245
    %297 = vmatpush.bf16.msra.mxu0 %v241
    %298 = vmatpush.bf16.msra.mxu0 %v237
    %299 = vmatpush.bf16.msra.mxu0 %v233
    %300 = vmatpush.bf16.msra.mxu0 %v229
    %301 = vmatmul.bf16.gmra.mxu0 %v125
    %v302 = vpop.f32.mrf.mxu0
    %v303 = vadd.f32 %v101, %v302
    %v304 = vpop.f32.mrf.mxu0
    %v305 = vadd.f32 %v101, %v304
    %306 = vmatmul.bf16.gmra.mxu0 %v126
    %v307 = vpop.f32.mrf.mxu0
    %v308 = vadd.f32 %v101, %v307
    %v309 = vpop.f32.mrf.mxu0
    %v310 = vadd.f32 %v101, %v309
    %311 = vmatmul.bf16.gmra.mxu0 %v127
    %v312 = vpop.f32.mrf.mxu0
    %v313 = vadd.f32 %v101, %v312
    %v314 = vpop.f32.mrf.mxu0
    %v315 = vadd.f32 %v101, %v314
    %316 = vmatmul.bf16.gmra.mxu0 %v128
    %v317 = vpop.f32.mrf.mxu0
    %v318 = vadd.f32 %v101, %v317
    %v319 = vpop.f32.mrf.mxu0
    %v320 = vadd.f32 %v101, %v319
    %321 = vdwg.mxu0
    %322 = vmatpush.bf16.msra.mxu0 %v258
    %323 = vmatpush.bf16.msra.mxu0 %v254
    %324 = vmatpush.bf16.msra.mxu0 %v250
    %325 = vmatpush.bf16.msra.mxu0 %v246
    %326 = vmatpush.bf16.msra.mxu0 %v242
    %327 = vmatpush.bf16.msra.mxu0 %v238
    %328 = vmatpush.bf16.msra.mxu0 %v234
    %329 = vmatpush.bf16.msra.mxu0 %v230
    %330 = vmatmul.bf16.gmra.mxu0 %v125
    %v331 = vpop.f32.mrf.mxu0
    %v332 = vadd.f32 %v102, %v331
    %v333 = vpop.f32.mrf.mxu0
    %v334 = vadd.f32 %v102, %v333
    %335 = vmatmul.bf16.gmra.mxu0 %v126
    %v336 = vpop.f32.mrf.mxu0
    %v337 = vadd.f32 %v102, %v336
    %v338 = vpop.f32.mrf.mxu0
    %v339 = vadd.f32 %v102, %v338
    %340 = vmatmul.bf16.gmra.mxu0 %v127
    %v341 = vpop.f32.mrf.mxu0
    %v342 = vadd.f32 %v102, %v341
    %v343 = vpop.f32.mrf.mxu0
    %v344 = vadd.f32 %v102, %v343
    %345 = vmatmul.bf16.gmra.mxu0 %v128
    %v346 = vpop.f32.mrf.mxu0
    %v347 = vadd.f32 %v102, %v346
    %v348 = vpop.f32.mrf.mxu0
    %v349 = vadd.f32 %v102, %v348
    %350 = vdwg.mxu0
    %351 = vmatpush.bf16.msra.mxu0 %v259
    %352 = vmatpush.bf16.msra.mxu0 %v255
    %353 = vmatpush.bf16.msra.mxu0 %v251
    %354 = vmatpush.bf16.msra.mxu0 %v247
    %355 = vmatpush.bf16.msra.mxu0 %v243
    %356 = vmatpush.bf16.msra.mxu0 %v239
    %357 = vmatpush.bf16.msra.mxu0 %v235
    %358 = vmatpush.bf16.msra.mxu0 %v231
    %359 = vmatmul.bf16.gmra.mxu0 %v125
    %v360 = vpop.f32.mrf.mxu0
    %v361 = vadd.f32 %v103, %v360
    %v362 = vpop.f32.mrf.mxu0
    %v363 = vadd.f32 %v103, %v362
    %364 = vmatmul.bf16.gmra.mxu0 %v126
    %v365 = vpop.f32.mrf.mxu0
    %v366 = vadd.f32 %v103, %v365
    %v367 = vpop.f32.mrf.mxu0
    %v368 = vadd.f32 %v103, %v367
    %369 = vmatmul.bf16.gmra.mxu0 %v127
    %v370 = vpop.f32.mrf.mxu0
    %v371 = vadd.f32 %v103, %v370
    %v372 = vpop.f32.mrf.mxu0
    %v373 = vadd.f32 %v103, %v372
    %374 = vmatmul.bf16.gmra.mxu0 %v128
    %v375 = vpop.f32.mrf.mxu0
    %v376 = vadd.f32 %v103, %v375
    %v377 = vpop.f32.mrf.mxu0
    %v378 = vadd.f32 %v103, %v377
    %379 = vdwg.mxu0
    %380 = vmatpush.bf16.msra.mxu0 %v260
    %381 = vmatpush.bf16.msra.mxu0 %v256
    %382 = vmatpush.bf16.msra.mxu0 %v252
    %383 = vmatpush.bf16.msra.mxu0 %v248
    %384 = vmatpush.bf16.msra.mxu0 %v244
    %385 = vmatpush.bf16.msra.mxu0 %v240
    %386 = vmatpush.bf16.msra.mxu0 %v236
    %387 = vmatpush.bf16.msra.mxu0 %v232
    %388 = vmatmul.bf16.gmra.mxu0 %v125
    %v389 = vpop.f32.mrf.mxu0
    %v390 = vadd.f32 %v104, %v389
    %v391 = vpop.f32.mrf.mxu0
    %v392 = vadd.f32 %v104, %v391
    %393 = vmatmul.bf16.gmra.mxu0 %v126
    %v394 = vpop.f32.mrf.mxu0
    %v395 = vadd.f32 %v104, %v394
    %v396 = vpop.f32.mrf.mxu0
    %v397 = vadd.f32 %v104, %v396
    %398 = vmatmul.bf16.gmra.mxu0 %v127
    %v399 = vpop.f32.mrf.mxu0
    %v400 = vadd.f32 %v104, %v399
    %v401 = vpop.f32.mrf.mxu0
    %v402 = vadd.f32 %v104, %v401
    %403 = vmatmul.bf16.gmra.mxu0 %v128
    %v404 = vpop.f32.mrf.mxu0
    %v405 = vadd.f32 %v104, %v404
    %v406 = vpop.f32.mrf.mxu0
    %v407 = vadd.f32 %v104, %v406
    %408 = vdwg.mxu0
    %409 = vst [vmem:[#allocation2] sm:$0xff] %v303
    %410 = vst [vmem:[#allocation2 + $0x8] sm:$0xff] %v332
    %411 = vst [vmem:[#allocation2 + $0x10] sm:$0xff] %v361
    %412 = vst [vmem:[#allocation2 + $0x18] sm:$0xff] %v390
    %413 = vst [vmem:[#allocation2 + $0x20] sm:$0xff] %v305
    %414 = vst [vmem:[#allocation2 + $0x28] sm:$0xff] %v334
    %415 = vst [vmem:[#allocation2 + $0x30] sm:$0xff] %v363
    %416 = vst [vmem:[#allocation2 + $0x38] sm:$0xff] %v392
    %417 = vst [vmem:[#allocation2 + $0x40] sm:$0xff] %v308
    %418 = vst [vmem:[#allocation2 + $0x48] sm:$0xff] %v337
    %419 = vst [vmem:[#allocation2 + $0x50] sm:$0xff] %v366
    %420 = vst [vmem:[#allocation2 + $0x58] sm:$0xff] %v395
    %421 = vst [vmem:[#allocation2 + $0x60] sm:$0xff] %v310
    %422 = vst [vmem:[#allocation2 + $0x68] sm:$0xff] %v339
    %423 = vst [vmem:[#allocation2 + $0x70] sm:$0xff] %v368
    %424 = vst [vmem:[#allocation2 + $0x78] sm:$0xff] %v397
    %425 = vst [vmem:[#allocation2 + $0x80] sm:$0xff] %v313
    %426 = vst [vmem:[#allocation2 + $0x88] sm:$0xff] %v342
    %427 = vst [vmem:[#allocation2 + $0x90] sm:$0xff] %v371
    %428 = vst [vmem:[#allocation2 + $0x98] sm:$0xff] %v400
    %429 = vst [vmem:[#allocation2 + $0xa0] sm:$0xff] %v315
    %430 = vst [vmem:[#allocation2 + $0xa8] sm:$0xff] %v344
    %431 = vst [vmem:[#allocation2 + $0xb0] sm:$0xff] %v373
    %432 = vst [vmem:[#allocation2 + $0xb8] sm:$0xff] %v402
    %433 = vst [vmem:[#allocation2 + $0xc0] sm:$0xff] %v318
    %434 = vst [vmem:[#allocation2 + $0xc8] sm:$0xff] %v347
    %435 = vst [vmem:[#allocation2 + $0xd0] sm:$0xff] %v376
    %436 = vst [vmem:[#allocation2 + $0xd8] sm:$0xff] %v405
    %437 = vst [vmem:[#allocation2 + $0xe0] sm:$0xff] %v320
    %438 = vst [vmem:[#allocation2 + $0xe8] sm:$0xff] %v349
    %439 = vst [vmem:[#allocation2 + $0xf0] sm:$0xff] %v378
    %440 = vst [vmem:[#allocation2 + $0xf8] sm:$0xff] %v407
    %v441 = vld [vmem:[%s1] sm:$0xff]
    %v442 = vld [vmem:[#allocation2] sm:$0xff]
    %v443 = vld [vmem:[#allocation2 + $0x8] sm:$0xff]
    %v444 = vld [vmem:[#allocation2 + $0x10] sm:$0xff]
    %v445 = vld [vmem:[#allocation2 + $0x18] sm:$0xff]
    %v446 = vld [vmem:[#allocation5] sm:$0xff]
    %v447 = vld [vmem:[#allocation5 + $0x8] sm:$0xff]
    %v448 = vld [vmem:[#allocation5 + $0x10] sm:$0xff]
    %v449 = vld [vmem:[#allocation5 + $0x18] sm:$0xff]
    %v450 = vld [vmem:[#allocation5 + $0x20] sm:$0xff]
    %v451 = vld [vmem:[#allocation5 + $0x28] sm:$0xff]
    %v452 = vld [vmem:[#allocation5 + $0x30] sm:$0xff]
    %v453 = vld [vmem:[#allocation5 + $0x38] sm:$0xff]
    %v454 = vld [vmem:[#allocation5 + $0x40] sm:$0xff]
    %v455 = vld [vmem:[#allocation5 + $0x48] sm:$0xff]
    %v456 = vld [vmem:[#allocation5 + $0x50] sm:$0xff]
    %v457 = vld [vmem:[#allocation5 + $0x58] sm:$0xff]
    %v458 = vld [vmem:[#allocation5 + $0x60] sm:$0xff]
    %v459 = vld [vmem:[#allocation5 + $0x68] sm:$0xff]
    %v460 = vld [vmem:[#allocation5 + $0x70] sm:$0xff]
    %v461 = vld [vmem:[#allocation5 + $0x78] sm:$0xff]
    %v462 = vld [vmem:[#allocation5 + $0x80] sm:$0xff]
    %v463 = vld [vmem:[#allocation5 + $0x88] sm:$0xff]
    %v464 = vld [vmem:[#allocation5 + $0x90] sm:$0xff]
    %v465 = vld [vmem:[#allocation5 + $0x98] sm:$0xff]
    %v466 = vld [vmem:[#allocation5 + $0xa0] sm:$0xff]
    %v467 = vld [vmem:[#allocation5 + $0xa8] sm:$0xff]
    %v468 = vld [vmem:[#allocation5 + $0xb0] sm:$0xff]
    %v469 = vld [vmem:[#allocation5 + $0xb8] sm:$0xff]
    %v470 = vld [vmem:[#allocation5 + $0xc0] sm:$0xff]
    %v471 = vld [vmem:[#allocation5 + $0xc8] sm:$0xff]
    %v472 = vld [vmem:[#allocation5 + $0xd0] sm:$0xff]
    %v473 = vld [vmem:[#allocation5 + $0xd8] sm:$0xff]
    %v474 = vld [vmem:[#allocation5 + $0xe0] sm:$0xff]
    %v475 = vld [vmem:[#allocation5 + $0xe8] sm:$0xff]
    %v476 = vld [vmem:[#allocation5 + $0xf0] sm:$0xff]
    %v477 = vld [vmem:[#allocation5 + $0xf8] sm:$0xff]
    %v510 = vunpack.c.l.b16 %v446
    %v511 = vunpack.c.h.b16 %v446
    %v512 = vunpack.c.l.b16 %v447
    %v513 = vunpack.c.h.b16 %v447
    %v514 = vunpack.c.l.b16 %v448
    %v515 = vunpack.c.h.b16 %v448
    %v516 = vunpack.c.l.b16 %v449
    %v517 = vunpack.c.h.b16 %v449
    %v518 = vunpack.c.l.b16 %v450
    %v519 = vunpack.c.h.b16 %v450
    %v520 = vunpack.c.l.b16 %v451
    %v521 = vunpack.c.h.b16 %v451
    %v522 = vunpack.c.l.b16 %v452
    %v523 = vunpack.c.h.b16 %v452
    %v524 = vunpack.c.l.b16 %v453
    %v525 = vunpack.c.h.b16 %v453
    %v526 = vunpack.c.l.b16 %v454
    %v527 = vunpack.c.h.b16 %v454
    %v528 = vunpack.c.l.b16 %v455
    %v529 = vunpack.c.h.b16 %v455
    %v530 = vunpack.c.l.b16 %v456
    %v531 = vunpack.c.h.b16 %v456
    %v532 = vunpack.c.l.b16 %v457
    %v533 = vunpack.c.h.b16 %v457
    %v534 = vunpack.c.l.b16 %v458
    %v535 = vunpack.c.h.b16 %v458
    %v536 = vunpack.c.l.b16 %v459
    %v537 = vunpack.c.h.b16 %v459
    %v538 = vunpack.c.l.b16 %v460
    %v539 = vunpack.c.h.b16 %v460
    %v540 = vunpack.c.l.b16 %v461
    %v541 = vunpack.c.h.b16 %v461
    %v542 = vunpack.c.l.b16 %v462
    %v543 = vunpack.c.h.b16 %v462
    %v544 = vunpack.c.l.b16 %v463
    %v545 = vunpack.c.h.b16 %v463
    %v546 = vunpack.c.l.b16 %v464
    %v547 = vunpack.c.h.b16 %v464
    %v548 = vunpack.c.l.b16 %v465
    %v549 = vunpack.c.h.b16 %v465
    %v550 = vunpack.c.l.b16 %v466
    %v551 = vunpack.c.h.b16 %v466
    %v552 = vunpack.c.l.b16 %v467
    %v553 = vunpack.c.h.b16 %v467
    %v554 = vunpack.c.l.b16 %v468
    %v555 = vunpack.c.h.b16 %v468
    %v556 = vunpack.c.l.b16 %v469
    %v557 = vunpack.c.h.b16 %v469
    %v558 = vunpack.c.l.b16 %v470
    %v559 = vunpack.c.h.b16 %v470
    %v560 = vunpack.c.l.b16 %v471
    %v561 = vunpack.c.h.b16 %v471
    %v562 = vunpack.c.l.b16 %v472
    %v563 = vunpack.c.h.b16 %v472
    %v564 = vunpack.c.l.b16 %v473
    %v565 = vunpack.c.h.b16 %v473
    %v566 = vunpack.c.l.b16 %v474
    %v567 = vunpack.c.h.b16 %v474
    %v568 = vunpack.c.l.b16 %v475
    %v569 = vunpack.c.h.b16 %v475
    %v570 = vunpack.c.l.b16 %v476
    %v571 = vunpack.c.h.b16 %v476
    %v572 = vunpack.c.l.b16 %v477
    %v573 = vunpack.c.h.b16 %v477
    %v574 = vpack.c.b16 %v514, %v510
    %v575 = vpack.c.b16 %v515, %v511
    %v576 = vpack.c.b16 %v516, %v512
    %v577 = vpack.c.b16 %v517, %v513
    %v578 = vpack.c.b16 %v522, %v518
    %v579 = vpack.c.b16 %v523, %v519
    %v580 = vpack.c.b16 %v524, %v520
    %v581 = vpack.c.b16 %v525, %v521
    %v582 = vpack.c.b16 %v530, %v526
    %v583 = vpack.c.b16 %v531, %v527
    %v584 = vpack.c.b16 %v532, %v528
    %v585 = vpack.c.b16 %v533, %v529
    %v586 = vpack.c.b16 %v538, %v534
    %v587 = vpack.c.b16 %v539, %v535
    %v588 = vpack.c.b16 %v540, %v536
    %v589 = vpack.c.b16 %v541, %v537
    %v590 = vpack.c.b16 %v546, %v542
    %v591 = vpack.c.b16 %v547, %v543
    %v592 = vpack.c.b16 %v548, %v544
    %v593 = vpack.c.b16 %v549, %v545
    %v594 = vpack.c.b16 %v554, %v550
    %v595 = vpack.c.b16 %v555, %v551
    %v596 = vpack.c.b16 %v556, %v552
    %v597 = vpack.c.b16 %v557, %v553
    %v598 = vpack.c.b16 %v562, %v558
    %v599 = vpack.c.b16 %v563, %v559
    %v600 = vpack.c.b16 %v564, %v560
    %v601 = vpack.c.b16 %v565, %v561
    %v602 = vpack.c.b16 %v570, %v566
    %v603 = vpack.c.b16 %v571, %v567
    %v604 = vpack.c.b16 %v572, %v568
    %v605 = vpack.c.b16 %v573, %v569
    %638 = vmatpush.bf16.msra.mxu0 %v602
    %639 = vmatpush.bf16.msra.mxu0 %v598
    %640 = vmatpush.bf16.msra.mxu0 %v594
    %641 = vmatpush.bf16.msra.mxu0 %v590
    %642 = vmatpush.bf16.msra.mxu0 %v586
    %643 = vmatpush.bf16.msra.mxu0 %v582
    %644 = vmatpush.bf16.msra.mxu0 %v578
    %645 = vmatpush.bf16.msra.mxu0 %v574
    %646 = vmatmul.bf16.gmra.mxu0 0
    %v647 = vpop.f32.mrf.mxu0
    %v648 = vadd.f32 0.0, %v647
    %v649 = vpop.f32.mrf.mxu0
    %650 = vdwg.mxu0
    %651 = vmatpush.bf16.msra.mxu0 %v603
    %652 = vmatpush.bf16.msra.mxu0 %v599
    %653 = vmatpush.bf16.msra.mxu0 %v595
    %654 = vmatpush.bf16.msra.mxu0 %v591
    %655 = vmatpush.bf16.msra.mxu0 %v587
    %656 = vmatpush.bf16.msra.mxu0 %v583
    %657 = vmatpush.bf16.msra.mxu0 %v579
    %658 = vmatpush.bf16.msra.mxu0 %v575
    %659 = vmatmul.bf16.gmra.mxu0 0
    %v660 = vpop.f32.mrf.mxu0
    %v661 = vadd.f32 0.0, %v660
    %v662 = vpop.f32.mrf.mxu0
    %663 = vdwg.mxu0
    %664 = vmatpush.bf16.msra.mxu0 %v604
    %665 = vmatpush.bf16.msra.mxu0 %v600
    %666 = vmatpush.bf16.msra.mxu0 %v596
    %667 = vmatpush.bf16.msra.mxu0 %v592
    %668 = vmatpush.bf16.msra.mxu0 %v588
    %669 = vmatpush.bf16.msra.mxu0 %v584
    %670 = vmatpush.bf16.msra.mxu0 %v580
    %671 = vmatpush.bf16.msra.mxu0 %v576
    %672 = vmatmul.bf16.gmra.mxu0 0
    %v673 = vpop.f32.mrf.mxu0
    %v674 = vadd.f32 0.0, %v673
    %v675 = vpop.f32.mrf.mxu0
    %676 = vdwg.mxu0
    %677 = vmatpush.bf16.msra.mxu0 %v605
    %678 = vmatpush.bf16.msra.mxu0 %v601
    %679 = vmatpush.bf16.msra.mxu0 %v597
    %680 = vmatpush.bf16.msra.mxu0 %v593
    %681 = vmatpush.bf16.msra.mxu0 %v589
    %682 = vmatpush.bf16.msra.mxu0 %v585
    %683 = vmatpush.bf16.msra.mxu0 %v581
    %684 = vmatpush.bf16.msra.mxu0 %v577
    %685 = vmatmul.bf16.gmra.mxu0 0
    %v686 = vpop.f32.mrf.mxu0
    %v687 = vadd.f32 0.0, %v686
    %v688 = vpop.f32.mrf.mxu0
    %689 = vdwg.mxu0
    %v690 = vadd.f32 %v442, %v648
    %v691 = vadd.f32 %v443, %v661
    %v692 = vadd.f32 %v444, %v674
    %v693 = vadd.f32 %v445, %v687
    %v694 = vxor.u32 %v690, 2147483648
    %v695 = vxor.u32 %v691, 2147483648
    %v696 = vxor.u32 %v692, 2147483648
    %v697 = vmul.f32 %v694, 1.442695
    %v698 = vpow.pop %v697
    %v699 = vmul.f32 %v695, 1.442695
    %v700 = vpow.pop %v699
    %v701 = vmul.f32 %v696, 1.442695
    %v702 = vpow.pop %v701
    %v703 = vadd.f32 %v698, 1.0
    %v704 = vadd.f32 %v700, 1.0
    %v705 = vadd.f32 %v702, 1.0
    %v706 = vrcp.pop %v703
    %v707 = vmul.f32 %v703, %v706
    %v708 = vsub.f32 1.0, %v707
    %v709 = vmul.f32 %v706, %v708
    %v710 = vadd.f32 %v706, %v709
    %vm711 = vweird.f32 %v703
    %vm712 = vweird.f32 %v706
    %vm713 = vmor %vm711, %vm712
    %v714 = vsel %vm713, %v706, %v710
    %v715 = vand.u32 2147483647, %v703
    %vm716 = vcmp.eq.f32.partialorder %v715, 8.507059e+37
    %v717 = vand.u32 %v703, 2147483648
    %v718 = vor.u32 1.1754944e-38, %v717
    %v719 = vsel %vm716, %v718, %v714
    %v720 = vmul.f32 1.0, %v719
    %v721 = vrcp.pop %v704
    %v722 = vmul.f32 %v704, %v721
    %v723 = vsub.f32 1.0, %v722
    %v724 = vmul.f32 %v721, %v723
    %v725 = vadd.f32 %v721, %v724
    %vm726 = vweird.f32 %v704
    %vm727 = vweird.f32 %v721
    %vm728 = vmor %vm726, %vm727
    %v729 = vsel %vm728, %v721, %v725
    %v730 = vand.u32 2147483647, %v704
    %vm731 = vcmp.eq.f32.partialorder %v730, 8.507059e+37
    %v732 = vand.u32 %v704, 2147483648
    %v733 = vor.u32 1.1754944e-38, %v732
    %v734 = vsel %vm731, %v733, %v729
    %v735 = vmul.f32 1.0, %v734
    %v736 = vrcp.pop %v705
    %v737 = vmul.f32 %v705, %v736
    %v738 = vsub.f32 1.0, %v737
    %v739 = vmul.f32 %v736, %v738
    %v740 = vadd.f32 %v736, %v739
    %vm741 = vweird.f32 %v705
    %vm742 = vweird.f32 %v736
    %vm743 = vmor %vm741, %vm742
    %v744 = vsel %vm743, %v736, %v740
    %v745 = vand.u32 2147483647, %v705
    %vm746 = vcmp.eq.f32.partialorder %v745, 8.507059e+37
    %v747 = vand.u32 %v705, 2147483648
    %v748 = vor.u32 1.1754944e-38, %v747
    %v749 = vsel %vm746, %v748, %v744
    %v750 = vmul.f32 1.0, %v749
    %v751 = vtanh.pop %v693
    %v752 = vmul.f32 %v735, 0.0
    %v753 = vmul.f32 %v720, %v751
    %v754 = vadd.f32 %v752, %v753
    %v755 = vtanh.pop %v754
    %v756 = vmul.f32 %v750, %v755
    %vm757 = vcmp.gt.s32.totalorder %v441, 0
    %v758 = vsel %vm757, 1, 0
    %759 = vset.pattern.permute.xlu0 0
    %760 = vperm.xlu0 %759, %v758
    %v761 = vpop.permute.xlu0 %760
    %vm762 = vcmp.eq.s32.totalorder %v761, 1
    %v763 = vsel %vm762, %v756, 0.0
    %v764 = vsel %vm762, %v754, 0.0
    %v765 = vld [vmem:[#allocation2 + $0x20] sm:$0xff]
    %v766 = vld [vmem:[#allocation2 + $0x28] sm:$0xff]
    %v767 = vld [vmem:[#allocation2 + $0x30] sm:$0xff]
    %v768 = vld [vmem:[#allocation2 + $0x38] sm:$0xff]
    %v769 = vpack.c.bf16 %v763, %v763
    %770 = vmatpush.bf16.msra.mxu0 %v602
    %771 = vmatpush.bf16.msra.mxu0 %v598
    %772 = vmatpush.bf16.msra.mxu0 %v594
    %773 = vmatpush.bf16.msra.mxu0 %v590
    %774 = vmatpush.bf16.msra.mxu0 %v586
    %775 = vmatpush.bf16.msra.mxu0 %v582
    %776 = vmatpush.bf16.msra.mxu0 %v578
    %777 = vmatpush.bf16.msra.mxu0 %v574
    %778 = vmatmul.bf16.gmra.mxu0 %v769
    %v779 = vpop.f32.mrf.mxu0
    %v780 = vadd.f32 0.0, %v779
    %v781 = vpop.f32.mrf.mxu0
    %782 = vdwg.mxu0
    %783 = vmatpush.bf16.msra.mxu0 %v603
    %784 = vmatpush.bf16.msra.mxu0 %v599
    %785 = vmatpush.bf16.msra.mxu0 %v595
    %786 = vmatpush.bf16.msra.mxu0 %v591
    %787 = vmatpush.bf16.msra.mxu0 %v587
    %788 = vmatpush.bf16.msra.mxu0 %v583
    %789 = vmatpush.bf16.msra.mxu0 %v579
    %790 = vmatpush.bf16.msra.mxu0 %v575
    %791 = vmatmul.bf16.gmra.mxu0 %v769
    %v792 = vpop.f32.mrf.mxu0
    %v793 = vadd.f32 0.0, %v792
    %v794 = vpop.f32.mrf.mxu0
    %795 = vdwg.mxu0
    %796 = vmatpush.bf16.msra.mxu0 %v604
    %797 = vmatpush.bf16.msra.mxu0 %v600
    %798 = vmatpush.bf16.msra.mxu0 %v596
    %799 = vmatpush.bf16.msra.mxu0 %v592
    %800 = vmatpush.bf16.msra.mxu0 %v588
    %801 = vmatpush.bf16.msra.mxu0 %v584
    %802 = vmatpush.bf16.msra.mxu0 %v580
    %803 = vmatpush.bf16.msra.mxu0 %v576
    %804 = vmatmul.bf16.gmra.mxu0 %v769
    %v805 = vpop.f32.mrf.mxu0
    %v806 = vadd.f32 0.0, %v805
    %v807 = vpop.f32.mrf.mxu0
    %808 = vdwg.mxu0
    %809 = vmatpush.bf16.msra.mxu0 %v605
    %810 = vmatpush.bf16.msra.mxu0 %v601
    %811 = vmatpush.bf16.msra.mxu0 %v597
    %812 = vmatpush.bf16.msra.mxu0 %v593
    %813 = vmatpush.bf16.msra.mxu0 %v589
    %814 = vmatpush.bf16.msra.mxu0 %v585
    %815 = vmatpush.bf16.msra.mxu0 %v581
    %816 = vmatpush.bf16.msra.mxu0 %v577
    %817 = vmatmul.bf16.gmra.mxu0 %v769
    %v818 = vpop.f32.mrf.mxu0
    %v819 = vadd.f32 0.0, %v818
    %v820 = vpop.f32.mrf.mxu0
    %821 = vdwg.mxu0
    %v822 = vadd.f32 %v765, %v780
    %v823 = vadd.f32 %v766, %v793
    %v824 = vadd.f32 %v767, %v806
    %v825 = vadd.f32 %v768, %v819
    %v826 = vxor.u32 %v822, 2147483648
    %v827 = vxor.u32 %v823, 2147483648
    %v828 = vxor.u32 %v824, 2147483648
    %v829 = vmul.f32 %v826, 1.442695
    %v830 = vpow.pop %v829
    %v831 = vmul.f32 %v827, 1.442695
    %v832 = vpow.pop %v831
    %v833 = vmul.f32 %v828, 1.442695
    %v834 = vpow.pop %v833
    %v835 = vadd.f32 %v830, 1.0
    %v836 = vadd.f32 %v832, 1.0
    %v837 = vadd.f32 %v834, 1.0
    %v838 = vrcp.pop %v835
    %v839 = vmul.f32 %v835, %v838
    %v840 = vsub.f32 1.0, %v839
    %v841 = vmul.f32 %v838, %v840
    %v842 = vadd.f32 %v838, %v841
    %vm843 = vweird.f32 %v835
    %vm844 = vweird.f32 %v838
    %vm845 = vmor %vm843, %vm844
    %v846 = vsel %vm845, %v838, %v842
    %v847 = vand.u32 2147483647, %v835
    %vm848 = vcmp.eq.f32.partialorder %v847, 8.507059e+37
    %v849 = vand.u32 %v835, 2147483648
    %v850 = vor.u32 1.1754944e-38, %v849
    %v851 = vsel %vm848, %v850, %v846
    %v852 = vmul.f32 1.0, %v851
    %v853 = vrcp.pop %v836
    %v854 = vmul.f32 %v836, %v853
    %v855 = vsub.f32 1.0, %v854
    %v856 = vmul.f32 %v853, %v855
    %v857 = vadd.f32 %v853, %v856
    %vm858 = vweird.f32 %v836
    %vm859 = vweird.f32 %v853
    %vm860 = vmor %vm858, %vm859
    %v861 = vsel %vm860, %v853, %v857
    %v862 = vand.u32 2147483647, %v836
    %vm863 = vcmp.eq.f32.partialorder %v862, 8.507059e+37
    %v864 = vand.u32 %v836, 2147483648
    %v865 = vor.u32 1.1754944e-38, %v864
    %v866 = vsel %vm863, %v865, %v861
    %v867 = vmul.f32 1.0, %v866
    %v868 = vrcp.pop %v837
    %v869 = vmul.f32 %v837, %v868
    %v870 = vsub.f32 1.0, %v869
    %v871 = vmul.f32 %v868, %v870
    %v872 = vadd.f32 %v868, %v871
    %vm873 = vweird.f32 %v837
    %vm874 = vweird.f32 %v868
    %vm875 = vmor %vm873, %vm874
    %v876 = vsel %vm875, %v868, %v872
    %v877 = vand.u32 2147483647, %v837
    %vm878 = vcmp.eq.f32.partialorder %v877, 8.507059e+37
    %v879 = vand.u32 %v837, 2147483648
    %v880 = vor.u32 1.1754944e-38, %v879
    %v881 = vsel %vm878, %v880, %v876
    %v882 = vmul.f32 1.0, %v881
    %v883 = vtanh.pop %v825
    %v884 = vmul.f32 %v867, %v764
    %v885 = vmul.f32 %v852, %v883
    %v886 = vadd.f32 %v884, %v885
    %v887 = vtanh.pop %v886
    %v888 = vmul.f32 %v882, %v887
    %vm889 = vcmp.gt.s32.totalorder %v441, 1
    %v890 = vsel %vm889, 1, 0
    %891 = vset.pattern.permute.xlu0 0
    %892 = vperm.xlu0 %891, %v890
    %v893 = vpop.permute.xlu0 %892
    %vm894 = vcmp.eq.s32.totalorder %v893, 1
    %v895 = vsel %vm894, %v888, %v763
    %v896 = vsel %vm894, %v886, %v764
    %v897 = vld [vmem:[#allocation2 + $0x40] sm:$0xff]
    %v898 = vld [vmem:[#allocation2 + $0x48] sm:$0xff]
    %v899 = vld [vmem:[#allocation2 + $0x50] sm:$0xff]
    %v900 = vld [vmem:[#allocation2 + $0x58] sm:$0xff]
    %v901 = vpack.c.bf16 %v895, %v895
    %902 = vmatpush.bf16.msra.mxu0 %v602
    %903 = vmatpush.bf16.msra.mxu0 %v598
    %904 = vmatpush.bf16.msra.mxu0 %v594
    %905 = vmatpush.bf16.msra.mxu0 %v590
    %906 = vmatpush.bf16.msra.mxu0 %v586
    %907 = vmatpush.bf16.msra.mxu0 %v582
    %908 = vmatpush.bf16.msra.mxu0 %v578
    %909 = vmatpush.bf16.msra.mxu0 %v574
    %910 = vmatmul.bf16.gmra.mxu0 %v901
    %v911 = vpop.f32.mrf.mxu0
    %v912 = vadd.f32 0.0, %v911
    %v913 = vpop.f32.mrf.mxu0
    %914 = vdwg.mxu0
    %915 = vmatpush.bf16.msra.mxu0 %v603
    %916 = vmatpush.bf16.msra.mxu0 %v599
    %917 = vmatpush.bf16.msra.mxu0 %v595
    %918 = vmatpush.bf16.msra.mxu0 %v591
    %919 = vmatpush.bf16.msra.mxu0 %v587
    %920 = vmatpush.bf16.msra.mxu0 %v583
    %921 = vmatpush.bf16.msra.mxu0 %v579
    %922 = vmatpush.bf16.msra.mxu0 %v575
    %923 = vmatmul.bf16.gmra.mxu0 %v901
    %v924 = vpop.f32.mrf.mxu0
    %v925 = vadd.f32 0.0, %v924
    %v926 = vpop.f32.mrf.mxu0
    %927 = vdwg.mxu0
    %928 = vmatpush.bf16.msra.mxu0 %v604
    %929 = vmatpush.bf16.msra.mxu0 %v600
    %930 = vmatpush.bf16.msra.mxu0 %v596
    %931 = vmatpush.bf16.msra.mxu0 %v592
    %932 = vmatpush.bf16.msra.mxu0 %v588
    %933 = vmatpush.bf16.msra.mxu0 %v584
    %934 = vmatpush.bf16.msra.mxu0 %v580
    %935 = vmatpush.bf16.msra.mxu0 %v576
    %936 = vmatmul.bf16.gmra.mxu0 %v901
    %v937 = vpop.f32.mrf.mxu0
    %v938 = vadd.f32 0.0, %v937
    %v939 = vpop.f32.mrf.mxu0
    %940 = vdwg.mxu0
    %941 = vmatpush.bf16.msra.mxu0 %v605
    %942 = vmatpush.bf16.msra.mxu0 %v601
    %943 = vmatpush.bf16.msra.mxu0 %v597
    %944 = vmatpush.bf16.msra.mxu0 %v593
    %945 = vmatpush.bf16.msra.mxu0 %v589
    %946 = vmatpush.bf16.msra.mxu0 %v585
    %947 = vmatpush.bf16.msra.mxu0 %v581
    %948 = vmatpush.bf16.msra.mxu0 %v577
    %949 = vmatmul.bf16.gmra.mxu0 %v901
    %v950 = vpop.f32.mrf.mxu0
    %v951 = vadd.f32 0.0, %v950
    %v952 = vpop.f32.mrf.mxu0
    %953 = vdwg.mxu0
    %v954 = vadd.f32 %v897, %v912
    %v955 = vadd.f32 %v898, %v925
    %v956 = vadd.f32 %v899, %v938
    %v957 = vadd.f32 %v900, %v951
    %v958 = vxor.u32 %v954, 2147483648
    %v959 = vxor.u32 %v955, 2147483648
    %v960 = vxor.u32 %v956, 2147483648
    %v961 = vmul.f32 %v958, 1.442695
    %v962 = vpow.pop %v961
    %v963 = vmul.f32 %v959, 1.442695
    %v964 = vpow.pop %v963
    %v965 = vmul.f32 %v960, 1.442695
    %v966 = vpow.pop %v965
    %v967 = vadd.f32 %v962, 1.0
    %v968 = vadd.f32 %v964, 1.0
    %v969 = vadd.f32 %v966, 1.0
    %v970 = vrcp.pop %v967
    %v971 = vmul.f32 %v967, %v970
    %v972 = vsub.f32 1.0, %v971
    %v973 = vmul.f32 %v970, %v972
    %v974 = vadd.f32 %v970, %v973
    %vm975 = vweird.f32 %v967
    %vm976 = vweird.f32 %v970
    %vm977 = vmor %vm975, %vm976
    %v978 = vsel %vm977, %v970, %v974
    %v979 = vand.u32 2147483647, %v967
    %vm980 = vcmp.eq.f32.partialorder %v979, 8.507059e+37
    %v981 = vand.u32 %v967, 2147483648
    %v982 = vor.u32 1.1754944e-38, %v981
    %v983 = vsel %vm980, %v982, %v978
    %v984 = vmul.f32 1.0, %v983
    %v985 = vrcp.pop %v968
    %v986 = vmul.f32 %v968, %v985
    %v987 = vsub.f32 1.0, %v986
    %v988 = vmul.f32 %v985, %v987
    %v989 = vadd.f32 %v985, %v988
    %vm990 = vweird.f32 %v968
    %vm991 = vweird.f32 %v985
    %vm992 = vmor %vm990, %vm991
    %v993 = vsel %vm992, %v985, %v989
    %v994 = vand.u32 2147483647, %v968
    %vm995 = vcmp.eq.f32.partialorder %v994, 8.507059e+37
    %v996 = vand.u32 %v968, 2147483648
    %v997 = vor.u32 1.1754944e-38, %v996
    %v998 = vsel %vm995, %v997, %v993
    %v999 = vmul.f32 1.0, %v998
    %v1000 = vrcp.pop %v969
    %v1001 = vmul.f32 %v969, %v1000
    %v1002 = vsub.f32 1.0, %v1001
    %v1003 = vmul.f32 %v1000, %v1002
    %v1004 = vadd.f32 %v1000, %v1003
    %vm1005 = vweird.f32 %v969
    %vm1006 = vweird.f32 %v1000
    %vm1007 = vmor %vm1005, %vm1006
    %v1008 = vsel %vm1007, %v1000, %v1004
    %v1009 = vand.u32 2147483647, %v969
    %vm1010 = vcmp.eq.f32.partialorder %v1009, 8.507059e+37
    %v1011 = vand.u32 %v969, 2147483648
    %v1012 = vor.u32 1.1754944e-38, %v1011
    %v1013 = vsel %vm1010, %v1012, %v1008
    %v1014 = vmul.f32 1.0, %v1013
    %v1015 = vtanh.pop %v957
    %v1016 = vmul.f32 %v999, %v896
    %v1017 = vmul.f32 %v984, %v1015
    %v1018 = vadd.f32 %v1016, %v1017
    %v1019 = vtanh.pop %v1018
    %v1020 = vmul.f32 %v1014, %v1019
    %vm1021 = vcmp.gt.s32.totalorder %v441, 2
    %v1022 = vsel %vm1021, 1, 0
    %1023 = vset.pattern.permute.xlu0 0
    %1024 = vperm.xlu0 %1023, %v1022
    %v1025 = vpop.permute.xlu0 %1024
    %vm1026 = vcmp.eq.s32.totalorder %v1025, 1
    %v1027 = vsel %vm1026, %v1020, %v895
    %v1028 = vsel %vm1026, %v1018, %v896
    %v1029 = vld [vmem:[#allocation2 + $0x60] sm:$0xff]
    %v1030 = vld [vmem:[#allocation2 + $0x68] sm:$0xff]
    %v1031 = vld [vmem:[#allocation2 + $0x70] sm:$0xff]
    %v1032 = vld [vmem:[#allocation2 + $0x78] sm:$0xff]
    %v1033 = vpack.c.bf16 %v1027, %v1027
    %1034 = vmatpush.bf16.msra.mxu0 %v602
    %1035 = vmatpush.bf16.msra.mxu0 %v598
    %1036 = vmatpush.bf16.msra.mxu0 %v594
    %1037 = vmatpush.bf16.msra.mxu0 %v590
    %1038 = vmatpush.bf16.msra.mxu0 %v586
    %1039 = vmatpush.bf16.msra.mxu0 %v582
    %1040 = vmatpush.bf16.msra.mxu0 %v578
    %1041 = vmatpush.bf16.msra.mxu0 %v574
    %1042 = vmatmul.bf16.gmra.mxu0 %v1033
    %v1043 = vpop.f32.mrf.mxu0
    %v1044 = vadd.f32 0.0, %v1043
    %v1045 = vpop.f32.mrf.mxu0
    %1046 = vdwg.mxu0
    %1047 = vmatpush.bf16.msra.mxu0 %v603
    %1048 = vmatpush.bf16.msra.mxu0 %v599
    %1049 = vmatpush.bf16.msra.mxu0 %v595
    %1050 = vmatpush.bf16.msra.mxu0 %v591
    %1051 = vmatpush.bf16.msra.mxu0 %v587
    %1052 = vmatpush.bf16.msra.mxu0 %v583
    %1053 = vmatpush.bf16.msra.mxu0 %v579
    %1054 = vmatpush.bf16.msra.mxu0 %v575
    %1055 = vmatmul.bf16.gmra.mxu0 %v1033
    %v1056 = vpop.f32.mrf.mxu0
    %v1057 = vadd.f32 0.0, %v1056
    %v1058 = vpop.f32.mrf.mxu0
    %1059 = vdwg.mxu0
    %1060 = vmatpush.bf16.msra.mxu0 %v604
    %1061 = vmatpush.bf16.msra.mxu0 %v600
    %1062 = vmatpush.bf16.msra.mxu0 %v596
    %1063 = vmatpush.bf16.msra.mxu0 %v592
    %1064 = vmatpush.bf16.msra.mxu0 %v588
    %1065 = vmatpush.bf16.msra.mxu0 %v584
    %1066 = vmatpush.bf16.msra.mxu0 %v580
    %1067 = vmatpush.bf16.msra.mxu0 %v576
    %1068 = vmatmul.bf16.gmra.mxu0 %v1033
    %v1069 = vpop.f32.mrf.mxu0
    %v1070 = vadd.f32 0.0, %v1069
    %v1071 = vpop.f32.mrf.mxu0
    %1072 = vdwg.mxu0
    %1073 = vmatpush.bf16.msra.mxu0 %v605
    %1074 = vmatpush.bf16.msra.mxu0 %v601
    %1075 = vmatpush.bf16.msra.mxu0 %v597
    %1076 = vmatpush.bf16.msra.mxu0 %v593
    %1077 = vmatpush.bf16.msra.mxu0 %v589
    %1078 = vmatpush.bf16.msra.mxu0 %v585
    %1079 = vmatpush.bf16.msra.mxu0 %v581
    %1080 = vmatpush.bf16.msra.mxu0 %v577
    %1081 = vmatmul.bf16.gmra.mxu0 %v1033
    %v1082 = vpop.f32.mrf.mxu0
    %v1083 = vadd.f32 0.0, %v1082
    %v1084 = vpop.f32.mrf.mxu0
    %1085 = vdwg.mxu0
    %v1086 = vadd.f32 %v1029, %v1044
    %v1087 = vadd.f32 %v1030, %v1057
    %v1088 = vadd.f32 %v1031, %v1070
    %v1089 = vadd.f32 %v1032, %v1083
    %v1090 = vxor.u32 %v1086, 2147483648
    %v1091 = vxor.u32 %v1087, 2147483648
    %v1092 = vxor.u32 %v1088, 2147483648
    %v1093 = vmul.f32 %v1090, 1.442695
    %v1094 = vpow.pop %v1093
    %v1095 = vmul.f32 %v1091, 1.442695
    %v1096 = vpow.pop %v1095
    %v1097 = vmul.f32 %v1092, 1.442695
    %v1098 = vpow.pop %v1097
    %v1099 = vadd.f32 %v1094, 1.0
    %v1100 = vadd.f32 %v1096, 1.0
    %v1101 = vadd.f32 %v1098, 1.0
    %v1102 = vrcp.pop %v1099
    %v1103 = vmul.f32 %v1099, %v1102
    %v1104 = vsub.f32 1.0, %v1103
    %v1105 = vmul.f32 %v1102, %v1104
    %v1106 = vadd.f32 %v1102, %v1105
    %vm1107 = vweird.f32 %v1099
    %vm1108 = vweird.f32 %v1102
    %vm1109 = vmor %vm1107, %vm1108
    %v1110 = vsel %vm1109, %v1102, %v1106
    %v1111 = vand.u32 2147483647, %v1099
    %vm1112 = vcmp.eq.f32.partialorder %v1111, 8.507059e+37
    %v1113 = vand.u32 %v1099, 2147483648
    %v1114 = vor.u32 1.1754944e-38, %v1113
    %v1115 = vsel %vm1112, %v1114, %v1110
    %v1116 = vmul.f32 1.0, %v1115
    %v1117 = vrcp.pop %v1100
    %v1118 = vmul.f32 %v1100, %v1117
    %v1119 = vsub.f32 1.0, %v1118
    %v1120 = vmul.f32 %v1117, %v1119
    %v1121 = vadd.f32 %v1117, %v1120
    %vm1122 = vweird.f32 %v1100
    %vm1123 = vweird.f32 %v1117
    %vm1124 = vmor %vm1122, %vm1123
    %v1125 = vsel %vm1124, %v1117, %v1121
    %v1126 = vand.u32 2147483647, %v1100
    %vm1127 = vcmp.eq.f32.partialorder %v1126, 8.507059e+37
    %v1128 = vand.u32 %v1100, 2147483648
    %v1129 = vor.u32 1.1754944e-38, %v1128
    %v1130 = vsel %vm1127, %v1129, %v1125
    %v1131 = vmul.f32 1.0, %v1130
    %v1132 = vrcp.pop %v1101
    %v1133 = vmul.f32 %v1101, %v1132
    %v1134 = vsub.f32 1.0, %v1133
    %v1135 = vmul.f32 %v1132, %v1134
    %v1136 = vadd.f32 %v1132, %v1135
    %vm1137 = vweird.f32 %v1101
    %vm1138 = vweird.f32 %v1132
    %vm1139 = vmor %vm1137, %vm1138
    %v1140 = vsel %vm1139, %v1132, %v1136
    %v1141 = vand.u32 2147483647, %v1101
    %vm1142 = vcmp.eq.f32.partialorder %v1141, 8.507059e+37
    %v1143 = vand.u32 %v1101, 2147483648
    %v1144 = vor.u32 1.1754944e-38, %v1143
    %v1145 = vsel %vm1142, %v1144, %v1140
    %v1146 = vmul.f32 1.0, %v1145
    %v1147 = vtanh.pop %v1089
    %v1148 = vmul.f32 %v1131, %v1028
    %v1149 = vmul.f32 %v1116, %v1147
    %v1150 = vadd.f32 %v1148, %v1149
    %v1151 = vtanh.pop %v1150
    %v1152 = vmul.f32 %v1146, %v1151
    %vm1153 = vcmp.gt.s32.totalorder %v441, 3
    %v1154 = vsel %vm1153, 1, 0
    %1155 = vset.pattern.permute.xlu0 0
    %1156 = vperm.xlu0 %1155, %v1154
    %v1157 = vpop.permute.xlu0 %1156
    %vm1158 = vcmp.eq.s32.totalorder %v1157, 1
    %v1159 = vsel %vm1158, %v1152, %v1027
    %v1160 = vsel %vm1158, %v1150, %v1028
    %v1161 = vld [vmem:[#allocation2 + $0x80] sm:$0xff]
    %v1162 = vld [vmem:[#allocation2 + $0x88] sm:$0xff]
    %v1163 = vld [vmem:[#allocation2 + $0x90] sm:$0xff]
    %v1164 = vld [vmem:[#allocation2 + $0x98] sm:$0xff]
    %v1165 = vpack.c.bf16 %v1159, %v1159
    %1166 = vmatpush.bf16.msra.mxu0 %v602
    %1167 = vmatpush.bf16.msra.mxu0 %v598
    %1168 = vmatpush.bf16.msra.mxu0 %v594
    %1169 = vmatpush.bf16.msra.mxu0 %v590
    %1170 = vmatpush.bf16.msra.mxu0 %v586
    %1171 = vmatpush.bf16.msra.mxu0 %v582
    %1172 = vmatpush.bf16.msra.mxu0 %v578
    %1173 = vmatpush.bf16.msra.mxu0 %v574
    %1174 = vmatmul.bf16.gmra.mxu0 %v1165
    %v1175 = vpop.f32.mrf.mxu0
    %v1176 = vadd.f32 0.0, %v1175
    %v1177 = vpop.f32.mrf.mxu0
    %1178 = vdwg.mxu0
    %1179 = vmatpush.bf16.msra.mxu0 %v603
    %1180 = vmatpush.bf16.msra.mxu0 %v599
    %1181 = vmatpush.bf16.msra.mxu0 %v595
    %1182 = vmatpush.bf16.msra.mxu0 %v591
    %1183 = vmatpush.bf16.msra.mxu0 %v587
    %1184 = vmatpush.bf16.msra.mxu0 %v583
    %1185 = vmatpush.bf16.msra.mxu0 %v579
    %1186 = vmatpush.bf16.msra.mxu0 %v575
    %1187 = vmatmul.bf16.gmra.mxu0 %v1165
    %v1188 = vpop.f32.mrf.mxu0
    %v1189 = vadd.f32 0.0, %v1188
    %v1190 = vpop.f32.mrf.mxu0
    %1191 = vdwg.mxu0
    %1192 = vmatpush.bf16.msra.mxu0 %v604
    %1193 = vmatpush.bf16.msra.mxu0 %v600
    %1194 = vmatpush.bf16.msra.mxu0 %v596
    %1195 = vmatpush.bf16.msra.mxu0 %v592
    %1196 = vmatpush.bf16.msra.mxu0 %v588
    %1197 = vmatpush.bf16.msra.mxu0 %v584
    %1198 = vmatpush.bf16.msra.mxu0 %v580
    %1199 = vmatpush.bf16.msra.mxu0 %v576
    %1200 = vmatmul.bf16.gmra.mxu0 %v1165
    %v1201 = vpop.f32.mrf.mxu0
    %v1202 = vadd.f32 0.0, %v1201
    %v1203 = vpop.f32.mrf.mxu0
    %1204 = vdwg.mxu0
    %1205 = vmatpush.bf16.msra.mxu0 %v605
    %1206 = vmatpush.bf16.msra.mxu0 %v601
    %1207 = vmatpush.bf16.msra.mxu0 %v597
    %1208 = vmatpush.bf16.msra.mxu0 %v593
    %1209 = vmatpush.bf16.msra.mxu0 %v589
    %1210 = vmatpush.bf16.msra.mxu0 %v585
    %1211 = vmatpush.bf16.msra.mxu0 %v581
    %1212 = vmatpush.bf16.msra.mxu0 %v577
    %1213 = vmatmul.bf16.gmra.mxu0 %v1165
    %v1214 = vpop.f32.mrf.mxu0
    %v1215 = vadd.f32 0.0, %v1214
    %v1216 = vpop.f32.mrf.mxu0
    %1217 = vdwg.mxu0
    %v1218 = vadd.f32 %v1161, %v1176
    %v1219 = vadd.f32 %v1162, %v1189
    %v1220 = vadd.f32 %v1163, %v1202
    %v1221 = vadd.f32 %v1164, %v1215
    %v1222 = vxor.u32 %v1218, 2147483648
    %v1223 = vxor.u32 %v1219, 2147483648
    %v1224 = vxor.u32 %v1220, 2147483648
    %v1225 = vmul.f32 %v1222, 1.442695
    %v1226 = vpow.pop %v1225
    %v1227 = vmul.f32 %v1223, 1.442695
    %v1228 = vpow.pop %v1227
    %v1229 = vmul.f32 %v1224, 1.442695
    %v1230 = vpow.pop %v1229
    %v1231 = vadd.f32 %v1226, 1.0
    %v1232 = vadd.f32 %v1228, 1.0
    %v1233 = vadd.f32 %v1230, 1.0
    %v1234 = vrcp.pop %v1231
    %v1235 = vmul.f32 %v1231, %v1234
    %v1236 = vsub.f32 1.0, %v1235
    %v1237 = vmul.f32 %v1234, %v1236
    %v1238 = vadd.f32 %v1234, %v1237
    %vm1239 = vweird.f32 %v1231
    %vm1240 = vweird.f32 %v1234
    %vm1241 = vmor %vm1239, %vm1240
    %v1242 = vsel %vm1241, %v1234, %v1238
    %v1243 = vand.u32 2147483647, %v1231
    %vm1244 = vcmp.eq.f32.partialorder %v1243, 8.507059e+37
    %v1245 = vand.u32 %v1231, 2147483648
    %v1246 = vor.u32 1.1754944e-38, %v1245
    %v1247 = vsel %vm1244, %v1246, %v1242
    %v1248 = vmul.f32 1.0, %v1247
    %v1249 = vrcp.pop %v1232
    %v1250 = vmul.f32 %v1232, %v1249
    %v1251 = vsub.f32 1.0, %v1250
    %v1252 = vmul.f32 %v1249, %v1251
    %v1253 = vadd.f32 %v1249, %v1252
    %vm1254 = vweird.f32 %v1232
    %vm1255 = vweird.f32 %v1249
    %vm1256 = vmor %vm1254, %vm1255
    %v1257 = vsel %vm1256, %v1249, %v1253
    %v1258 = vand.u32 2147483647, %v1232
    %vm1259 = vcmp.eq.f32.partialorder %v1258, 8.507059e+37
    %v1260 = vand.u32 %v1232, 2147483648
    %v1261 = vor.u32 1.1754944e-38, %v1260
    %v1262 = vsel %vm1259, %v1261, %v1257
    %v1263 = vmul.f32 1.0, %v1262
    %v1264 = vrcp.pop %v1233
    %v1265 = vmul.f32 %v1233, %v1264
    %v1266 = vsub.f32 1.0, %v1265
    %v1267 = vmul.f32 %v1264, %v1266
    %v1268 = vadd.f32 %v1264, %v1267
    %vm1269 = vweird.f32 %v1233
    %vm1270 = vweird.f32 %v1264
    %vm1271 = vmor %vm1269, %vm1270
    %v1272 = vsel %vm1271, %v1264, %v1268
    %v1273 = vand.u32 2147483647, %v1233
    %vm1274 = vcmp.eq.f32.partialorder %v1273, 8.507059e+37
    %v1275 = vand.u32 %v1233, 2147483648
    %v1276 = vor.u32 1.1754944e-38, %v1275
    %v1277 = vsel %vm1274, %v1276, %v1272
    %v1278 = vmul.f32 1.0, %v1277
    %v1279 = vtanh.pop %v1221
    %v1280 = vmul.f32 %v1263, %v1160
    %v1281 = vmul.f32 %v1248, %v1279
    %v1282 = vadd.f32 %v1280, %v1281
    %v1283 = vtanh.pop %v1282
    %v1284 = vmul.f32 %v1278, %v1283
    %vm1285 = vcmp.gt.s32.totalorder %v441, 4
    %v1286 = vsel %vm1285, 1, 0
    %1287 = vset.pattern.permute.xlu0 0
    %1288 = vperm.xlu0 %1287, %v1286
    %v1289 = vpop.permute.xlu0 %1288
    %vm1290 = vcmp.eq.s32.totalorder %v1289, 1
    %v1291 = vsel %vm1290, %v1284, %v1159
    %v1292 = vsel %vm1290, %v1282, %v1160
    %v1293 = vld [vmem:[#allocation2 + $0xa0] sm:$0xff]
    %v1294 = vld [vmem:[#allocation2 + $0xa8] sm:$0xff]
    %v1295 = vld [vmem:[#allocation2 + $0xb0] sm:$0xff]
    %v1296 = vld [vmem:[#allocation2 + $0xb8] sm:$0xff]
    %v1297 = vpack.c.bf16 %v1291, %v1291
    %1298 = vmatpush.bf16.msra.mxu0 %v602
    %1299 = vmatpush.bf16.msra.mxu0 %v598
    %1300 = vmatpush.bf16.msra.mxu0 %v594
    %1301 = vmatpush.bf16.msra.mxu0 %v590
    %1302 = vmatpush.bf16.msra.mxu0 %v586
    %1303 = vmatpush.bf16.msra.mxu0 %v582
    %1304 = vmatpush.bf16.msra.mxu0 %v578
    %1305 = vmatpush.bf16.msra.mxu0 %v574
    %1306 = vmatmul.bf16.gmra.mxu0 %v1297
    %v1307 = vpop.f32.mrf.mxu0
    %v1308 = vadd.f32 0.0, %v1307
    %v1309 = vpop.f32.mrf.mxu0
    %1310 = vdwg.mxu0
    %1311 = vmatpush.bf16.msra.mxu0 %v603
    %1312 = vmatpush.bf16.msra.mxu0 %v599
    %1313 = vmatpush.bf16.msra.mxu0 %v595
    %1314 = vmatpush.bf16.msra.mxu0 %v591
    %1315 = vmatpush.bf16.msra.mxu0 %v587
    %1316 = vmatpush.bf16.msra.mxu0 %v583
    %1317 = vmatpush.bf16.msra.mxu0 %v579
    %1318 = vmatpush.bf16.msra.mxu0 %v575
    %1319 = vmatmul.bf16.gmra.mxu0 %v1297
    %v1320 = vpop.f32.mrf.mxu0
    %v1321 = vadd.f32 0.0, %v1320
    %v1322 = vpop.f32.mrf.mxu0
    %1323 = vdwg.mxu0
    %1324 = vmatpush.bf16.msra.mxu0 %v604
    %1325 = vmatpush.bf16.msra.mxu0 %v600
    %1326 = vmatpush.bf16.msra.mxu0 %v596
    %1327 = vmatpush.bf16.msra.mxu0 %v592
    %1328 = vmatpush.bf16.msra.mxu0 %v588
    %1329 = vmatpush.bf16.msra.mxu0 %v584
    %1330 = vmatpush.bf16.msra.mxu0 %v580
    %1331 = vmatpush.bf16.msra.mxu0 %v576
    %1332 = vmatmul.bf16.gmra.mxu0 %v1297
    %v1333 = vpop.f32.mrf.mxu0
    %v1334 = vadd.f32 0.0, %v1333
    %v1335 = vpop.f32.mrf.mxu0
    %1336 = vdwg.mxu0
    %1337 = vmatpush.bf16.msra.mxu0 %v605
    %1338 = vmatpush.bf16.msra.mxu0 %v601
    %1339 = vmatpush.bf16.msra.mxu0 %v597
    %1340 = vmatpush.bf16.msra.mxu0 %v593
    %1341 = vmatpush.bf16.msra.mxu0 %v589
    %1342 = vmatpush.bf16.msra.mxu0 %v585
    %1343 = vmatpush.bf16.msra.mxu0 %v581
    %1344 = vmatpush.bf16.msra.mxu0 %v577
    %1345 = vmatmul.bf16.gmra.mxu0 %v1297
    %v1346 = vpop.f32.mrf.mxu0
    %v1347 = vadd.f32 0.0, %v1346
    %v1348 = vpop.f32.mrf.mxu0
    %1349 = vdwg.mxu0
    %v1350 = vadd.f32 %v1293, %v1308
    %v1351 = vadd.f32 %v1294, %v1321
    %v1352 = vadd.f32 %v1295, %v1334
    %v1353 = vadd.f32 %v1296, %v1347
    %v1354 = vxor.u32 %v1350, 2147483648
    %v1355 = vxor.u32 %v1351, 2147483648
    %v1356 = vxor.u32 %v1352, 2147483648
    %v1357 = vmul.f32 %v1354, 1.442695
    %v1358 = vpow.pop %v1357
    %v1359 = vmul.f32 %v1355, 1.442695
    %v1360 = vpow.pop %v1359
    %v1361 = vmul.f32 %v1356, 1.442695
    %v1362 = vpow.pop %v1361
    %v1363 = vadd.f32 %v1358, 1.0
    %v1364 = vadd.f32 %v1360, 1.0
    %v1365 = vadd.f32 %v1362, 1.0
    %v1366 = vrcp.pop %v1363
    %v1367 = vmul.f32 %v1363, %v1366
    %v1368 = vsub.f32 1.0, %v1367
    %v1369 = vmul.f32 %v1366, %v1368
    %v1370 = vadd.f32 %v1366, %v1369
    %vm1371 = vweird.f32 %v1363
    %vm1372 = vweird.f32 %v1366
    %vm1373 = vmor %vm1371, %vm1372
    %v1374 = vsel %vm1373, %v1366, %v1370
    %v1375 = vand.u32 2147483647, %v1363
    %vm1376 = vcmp.eq.f32.partialorder %v1375, 8.507059e+37
    %v1377 = vand.u32 %v1363, 2147483648
    %v1378 = vor.u32 1.1754944e-38, %v1377
    %v1379 = vsel %vm1376, %v1378, %v1374
    %v1380 = vmul.f32 1.0, %v1379
    %v1381 = vrcp.pop %v1364
    %v1382 = vmul.f32 %v1364, %v1381
    %v1383 = vsub.f32 1.0, %v1382
    %v1384 = vmul.f32 %v1381, %v1383
    %v1385 = vadd.f32 %v1381, %v1384
    %vm1386 = vweird.f32 %v1364
    %vm1387 = vweird.f32 %v1381
    %vm1388 = vmor %vm1386, %vm1387
    %v1389 = vsel %vm1388, %v1381, %v1385
    %v1390 = vand.u32 2147483647, %v1364
    %vm1391 = vcmp.eq.f32.partialorder %v1390, 8.507059e+37
    %v1392 = vand.u32 %v1364, 2147483648
    %v1393 = vor.u32 1.1754944e-38, %v1392
    %v1394 = vsel %vm1391, %v1393, %v1389
    %v1395 = vmul.f32 1.0, %v1394
    %v1396 = vrcp.pop %v1365
    %v1397 = vmul.f32 %v1365, %v1396
    %v1398 = vsub.f32 1.0, %v1397
    %v1399 = vmul.f32 %v1396, %v1398
    %v1400 = vadd.f32 %v1396, %v1399
    %vm1401 = vweird.f32 %v1365
    %vm1402 = vweird.f32 %v1396
    %vm1403 = vmor %vm1401, %vm1402
    %v1404 = vsel %vm1403, %v1396, %v1400
    %v1405 = vand.u32 2147483647, %v1365
    %vm1406 = vcmp.eq.f32.partialorder %v1405, 8.507059e+37
    %v1407 = vand.u32 %v1365, 2147483648
    %v1408 = vor.u32 1.1754944e-38, %v1407
    %v1409 = vsel %vm1406, %v1408, %v1404
    %v1410 = vmul.f32 1.0, %v1409
    %v1411 = vtanh.pop %v1353
    %v1412 = vmul.f32 %v1395, %v1292
    %v1413 = vmul.f32 %v1380, %v1411
    %v1414 = vadd.f32 %v1412, %v1413
    %v1415 = vtanh.pop %v1414
    %v1416 = vmul.f32 %v1410, %v1415
    %vm1417 = vcmp.gt.s32.totalorder %v441, 5
    %v1418 = vsel %vm1417, 1, 0
    %1419 = vset.pattern.permute.xlu0 0
    %1420 = vperm.xlu0 %1419, %v1418
    %v1421 = vpop.permute.xlu0 %1420
    %vm1422 = vcmp.eq.s32.totalorder %v1421, 1
    %v1423 = vsel %vm1422, %v1416, %v1291
    %v1424 = vsel %vm1422, %v1414, %v1292
    %v1425 = vld [vmem:[#allocation2 + $0xc0] sm:$0xff]
    %v1426 = vld [vmem:[#allocation2 + $0xc8] sm:$0xff]
    %v1427 = vld [vmem:[#allocation2 + $0xd0] sm:$0xff]
    %v1428 = vld [vmem:[#allocation2 + $0xd8] sm:$0xff]
    %v1429 = vpack.c.bf16 %v1423, %v1423
    %1430 = vmatpush.bf16.msra.mxu0 %v602
    %1431 = vmatpush.bf16.msra.mxu0 %v598
    %1432 = vmatpush.bf16.msra.mxu0 %v594
    %1433 = vmatpush.bf16.msra.mxu0 %v590
    %1434 = vmatpush.bf16.msra.mxu0 %v586
    %1435 = vmatpush.bf16.msra.mxu0 %v582
    %1436 = vmatpush.bf16.msra.mxu0 %v578
    %1437 = vmatpush.bf16.msra.mxu0 %v574
    %1438 = vmatmul.bf16.gmra.mxu0 %v1429
    %v1439 = vpop.f32.mrf.mxu0
    %v1440 = vadd.f32 0.0, %v1439
    %v1441 = vpop.f32.mrf.mxu0
    %1442 = vdwg.mxu0
    %1443 = vmatpush.bf16.msra.mxu0 %v603
    %1444 = vmatpush.bf16.msra.mxu0 %v599
    %1445 = vmatpush.bf16.msra.mxu0 %v595
    %1446 = vmatpush.bf16.msra.mxu0 %v591
    %1447 = vmatpush.bf16.msra.mxu0 %v587
    %1448 = vmatpush.bf16.msra.mxu0 %v583
    %1449 = vmatpush.bf16.msra.mxu0 %v579
    %1450 = vmatpush.bf16.msra.mxu0 %v575
    %1451 = vmatmul.bf16.gmra.mxu0 %v1429
    %v1452 = vpop.f32.mrf.mxu0
    %v1453 = vadd.f32 0.0, %v1452
    %v1454 = vpop.f32.mrf.mxu0
    %1455 = vdwg.mxu0
    %1456 = vmatpush.bf16.msra.mxu0 %v604
    %1457 = vmatpush.bf16.msra.mxu0 %v600
    %1458 = vmatpush.bf16.msra.mxu0 %v596
    %1459 = vmatpush.bf16.msra.mxu0 %v592
    %1460 = vmatpush.bf16.msra.mxu0 %v588
    %1461 = vmatpush.bf16.msra.mxu0 %v584
    %1462 = vmatpush.bf16.msra.mxu0 %v580
    %1463 = vmatpush.bf16.msra.mxu0 %v576
    %1464 = vmatmul.bf16.gmra.mxu0 %v1429
    %v1465 = vpop.f32.mrf.mxu0
    %v1466 = vadd.f32 0.0, %v1465
    %v1467 = vpop.f32.mrf.mxu0
    %1468 = vdwg.mxu0
    %1469 = vmatpush.bf16.msra.mxu0 %v605
    %1470 = vmatpush.bf16.msra.mxu0 %v601
    %1471 = vmatpush.bf16.msra.mxu0 %v597
    %1472 = vmatpush.bf16.msra.mxu0 %v593
    %1473 = vmatpush.bf16.msra.mxu0 %v589
    %1474 = vmatpush.bf16.msra.mxu0 %v585
    %1475 = vmatpush.bf16.msra.mxu0 %v581
    %1476 = vmatpush.bf16.msra.mxu0 %v577
    %1477 = vmatmul.bf16.gmra.mxu0 %v1429
    %v1478 = vpop.f32.mrf.mxu0
    %v1479 = vadd.f32 0.0, %v1478
    %v1480 = vpop.f32.mrf.mxu0
    %1481 = vdwg.mxu0
    %v1482 = vadd.f32 %v1425, %v1440
    %v1483 = vadd.f32 %v1426, %v1453
    %v1484 = vadd.f32 %v1427, %v1466
    %v1485 = vadd.f32 %v1428, %v1479
    %v1486 = vxor.u32 %v1482, 2147483648
    %v1487 = vxor.u32 %v1483, 2147483648
    %v1488 = vxor.u32 %v1484, 2147483648
    %v1489 = vmul.f32 %v1486, 1.442695
    %v1490 = vpow.pop %v1489
    %v1491 = vmul.f32 %v1487, 1.442695
    %v1492 = vpow.pop %v1491
    %v1493 = vmul.f32 %v1488, 1.442695
    %v1494 = vpow.pop %v1493
    %v1495 = vadd.f32 %v1490, 1.0
    %v1496 = vadd.f32 %v1492, 1.0
    %v1497 = vadd.f32 %v1494, 1.0
    %v1498 = vrcp.pop %v1495
    %v1499 = vmul.f32 %v1495, %v1498
    %v1500 = vsub.f32 1.0, %v1499
    %v1501 = vmul.f32 %v1498, %v1500
    %v1502 = vadd.f32 %v1498, %v1501
    %vm1503 = vweird.f32 %v1495
    %vm1504 = vweird.f32 %v1498
    %vm1505 = vmor %vm1503, %vm1504
    %v1506 = vsel %vm1505, %v1498, %v1502
    %v1507 = vand.u32 2147483647, %v1495
    %vm1508 = vcmp.eq.f32.partialorder %v1507, 8.507059e+37
    %v1509 = vand.u32 %v1495, 2147483648
    %v1510 = vor.u32 1.1754944e-38, %v1509
    %v1511 = vsel %vm1508, %v1510, %v1506
    %v1512 = vmul.f32 1.0, %v1511
    %v1513 = vrcp.pop %v1496
    %v1514 = vmul.f32 %v1496, %v1513
    %v1515 = vsub.f32 1.0, %v1514
    %v1516 = vmul.f32 %v1513, %v1515
    %v1517 = vadd.f32 %v1513, %v1516
    %vm1518 = vweird.f32 %v1496
    %vm1519 = vweird.f32 %v1513
    %vm1520 = vmor %vm1518, %vm1519
    %v1521 = vsel %vm1520, %v1513, %v1517
    %v1522 = vand.u32 2147483647, %v1496
    %vm1523 = vcmp.eq.f32.partialorder %v1522, 8.507059e+37
    %v1524 = vand.u32 %v1496, 2147483648
    %v1525 = vor.u32 1.1754944e-38, %v1524
    %v1526 = vsel %vm1523, %v1525, %v1521
    %v1527 = vmul.f32 1.0, %v1526
    %v1528 = vrcp.pop %v1497
    %v1529 = vmul.f32 %v1497, %v1528
    %v1530 = vsub.f32 1.0, %v1529
    %v1531 = vmul.f32 %v1528, %v1530
    %v1532 = vadd.f32 %v1528, %v1531
    %vm1533 = vweird.f32 %v1497
    %vm1534 = vweird.f32 %v1528
    %vm1535 = vmor %vm1533, %vm1534
    %v1536 = vsel %vm1535, %v1528, %v1532
    %v1537 = vand.u32 2147483647, %v1497
    %vm1538 = vcmp.eq.f32.partialorder %v1537, 8.507059e+37
    %v1539 = vand.u32 %v1497, 2147483648
    %v1540 = vor.u32 1.1754944e-38, %v1539
    %v1541 = vsel %vm1538, %v1540, %v1536
    %v1542 = vmul.f32 1.0, %v1541
    %v1543 = vtanh.pop %v1485
    %v1544 = vmul.f32 %v1527, %v1424
    %v1545 = vmul.f32 %v1512, %v1543
    %v1546 = vadd.f32 %v1544, %v1545
    %v1547 = vtanh.pop %v1546
    %v1548 = vmul.f32 %v1542, %v1547
    %vm1549 = vcmp.gt.s32.totalorder %v441, 6
    %v1550 = vsel %vm1549, 1, 0
    %1551 = vset.pattern.permute.xlu0 0
    %1552 = vperm.xlu0 %1551, %v1550
    %v1553 = vpop.permute.xlu0 %1552
    %vm1554 = vcmp.eq.s32.totalorder %v1553, 1
    %v1555 = vsel %vm1554, %v1548, %v1423
    %v1556 = vsel %vm1554, %v1546, %v1424
    %v1557 = vld [vmem:[#allocation2 + $0xe0] sm:$0xff]
    %v1558 = vld [vmem:[#allocation2 + $0xe8] sm:$0xff]
    %v1559 = vld [vmem:[#allocation2 + $0xf0] sm:$0xff]
    %v1560 = vld [vmem:[#allocation2 + $0xf8] sm:$0xff]
    %v1561 = vpack.c.bf16 %v1555, %v1555
    %1562 = vmatpush.bf16.msra.mxu0 %v602
    %1563 = vmatpush.bf16.msra.mxu0 %v598
    %1564 = vmatpush.bf16.msra.mxu0 %v594
    %1565 = vmatpush.bf16.msra.mxu0 %v590
    %1566 = vmatpush.bf16.msra.mxu0 %v586
    %1567 = vmatpush.bf16.msra.mxu0 %v582
    %1568 = vmatpush.bf16.msra.mxu0 %v578
    %1569 = vmatpush.bf16.msra.mxu0 %v574
    %1570 = vmatmul.bf16.gmra.mxu0 %v1561
    %v1571 = vpop.f32.mrf.mxu0
    %v1572 = vadd.f32 0.0, %v1571
    %v1573 = vpop.f32.mrf.mxu0
    %1574 = vdwg.mxu0
    %1575 = vmatpush.bf16.msra.mxu0 %v603
    %1576 = vmatpush.bf16.msra.mxu0 %v599
    %1577 = vmatpush.bf16.msra.mxu0 %v595
    %1578 = vmatpush.bf16.msra.mxu0 %v591
    %1579 = vmatpush.bf16.msra.mxu0 %v587
    %1580 = vmatpush.bf16.msra.mxu0 %v583
    %1581 = vmatpush.bf16.msra.mxu0 %v579
    %1582 = vmatpush.bf16.msra.mxu0 %v575
    %1583 = vmatmul.bf16.gmra.mxu0 %v1561
    %v1584 = vpop.f32.mrf.mxu0
    %v1585 = vadd.f32 0.0, %v1584
    %v1586 = vpop.f32.mrf.mxu0
    %1587 = vdwg.mxu0
    %1588 = vmatpush.bf16.msra.mxu0 %v604
    %1589 = vmatpush.bf16.msra.mxu0 %v600
    %1590 = vmatpush.bf16.msra.mxu0 %v596
    %1591 = vmatpush.bf16.msra.mxu0 %v592
    %1592 = vmatpush.bf16.msra.mxu0 %v588
    %1593 = vmatpush.bf16.msra.mxu0 %v584
    %1594 = vmatpush.bf16.msra.mxu0 %v580
    %1595 = vmatpush.bf16.msra.mxu0 %v576
    %1596 = vmatmul.bf16.gmra.mxu0 %v1561
    %v1597 = vpop.f32.mrf.mxu0
    %v1598 = vadd.f32 0.0, %v1597
    %v1599 = vpop.f32.mrf.mxu0
    %1600 = vdwg.mxu0
    %1601 = vmatpush.bf16.msra.mxu0 %v605
    %1602 = vmatpush.bf16.msra.mxu0 %v601
    %1603 = vmatpush.bf16.msra.mxu0 %v597
    %1604 = vmatpush.bf16.msra.mxu0 %v593
    %1605 = vmatpush.bf16.msra.mxu0 %v589
    %1606 = vmatpush.bf16.msra.mxu0 %v585
    %1607 = vmatpush.bf16.msra.mxu0 %v581
    %1608 = vmatpush.bf16.msra.mxu0 %v577
    %1609 = vmatmul.bf16.gmra.mxu0 %v1561
    %v1610 = vpop.f32.mrf.mxu0
    %v1611 = vadd.f32 0.0, %v1610
    %v1612 = vpop.f32.mrf.mxu0
    %1613 = vdwg.mxu0
    %v1614 = vadd.f32 %v1557, %v1572
    %v1615 = vadd.f32 %v1558, %v1585
    %v1616 = vadd.f32 %v1559, %v1598
    %v1617 = vadd.f32 %v1560, %v1611
    %v1618 = vxor.u32 %v1614, 2147483648
    %v1619 = vxor.u32 %v1615, 2147483648
    %v1620 = vxor.u32 %v1616, 2147483648
    %v1621 = vmul.f32 %v1618, 1.442695
    %v1622 = vpow.pop %v1621
    %v1623 = vmul.f32 %v1619, 1.442695
    %v1624 = vpow.pop %v1623
    %v1625 = vmul.f32 %v1620, 1.442695
    %v1626 = vpow.pop %v1625
    %v1627 = vadd.f32 %v1622, 1.0
    %v1628 = vadd.f32 %v1624, 1.0
    %v1629 = vadd.f32 %v1626, 1.0
    %v1630 = vrcp.pop %v1627
    %v1631 = vmul.f32 %v1627, %v1630
    %v1632 = vsub.f32 1.0, %v1631
    %v1633 = vmul.f32 %v1630, %v1632
    %v1634 = vadd.f32 %v1630, %v1633
    %vm1635 = vweird.f32 %v1627
    %vm1636 = vweird.f32 %v1630
    %vm1637 = vmor %vm1635, %vm1636
    %v1638 = vsel %vm1637, %v1630, %v1634
    %v1639 = vand.u32 2147483647, %v1627
    %vm1640 = vcmp.eq.f32.partialorder %v1639, 8.507059e+37
    %v1641 = vand.u32 %v1627, 2147483648
    %v1642 = vor.u32 1.1754944e-38, %v1641
    %v1643 = vsel %vm1640, %v1642, %v1638
    %v1644 = vmul.f32 1.0, %v1643
    %v1645 = vrcp.pop %v1628
    %v1646 = vmul.f32 %v1628, %v1645
    %v1647 = vsub.f32 1.0, %v1646
    %v1648 = vmul.f32 %v1645, %v1647
    %v1649 = vadd.f32 %v1645, %v1648
    %vm1650 = vweird.f32 %v1628
    %vm1651 = vweird.f32 %v1645
    %vm1652 = vmor %vm1650, %vm1651
    %v1653 = vsel %vm1652, %v1645, %v1649
    %v1654 = vand.u32 2147483647, %v1628
    %vm1655 = vcmp.eq.f32.partialorder %v1654, 8.507059e+37
    %v1656 = vand.u32 %v1628, 2147483648
    %v1657 = vor.u32 1.1754944e-38, %v1656
    %v1658 = vsel %vm1655, %v1657, %v1653
    %v1659 = vmul.f32 1.0, %v1658
    %v1660 = vrcp.pop %v1629
    %v1661 = vmul.f32 %v1629, %v1660
    %v1662 = vsub.f32 1.0, %v1661
    %v1663 = vmul.f32 %v1660, %v1662
    %v1664 = vadd.f32 %v1660, %v1663
    %vm1665 = vweird.f32 %v1629
    %vm1666 = vweird.f32 %v1660
    %vm1667 = vmor %vm1665, %vm1666
    %v1668 = vsel %vm1667, %v1660, %v1664
    %v1669 = vand.u32 2147483647, %v1629
    %vm1670 = vcmp.eq.f32.partialorder %v1669, 8.507059e+37
    %v1671 = vand.u32 %v1629, 2147483648
    %v1672 = vor.u32 1.1754944e-38, %v1671
    %v1673 = vsel %vm1670, %v1672, %v1668
    %v1674 = vmul.f32 1.0, %v1673
    %v1675 = vtanh.pop %v1617
    %v1676 = vmul.f32 %v1659, %v1556
    %v1677 = vmul.f32 %v1644, %v1675
    %v1678 = vadd.f32 %v1676, %v1677
    %v1679 = vtanh.pop %v1678
    %v1680 = vmul.f32 %v1674, %v1679
    %vm1681 = vcmp.gt.s32.totalorder %v441, 7
    %v1682 = vsel %vm1681, 1, 0
    %1683 = vset.pattern.permute.xlu0 0
    %1684 = vperm.xlu0 %1683, %v1682
    %v1685 = vpop.permute.xlu0 %1684
    %vm1686 = vcmp.eq.s32.totalorder %v1685, 1
    %v1687 = vsel %vm1686, %v1680, %v1555
    %v1688 = vpack.c.bf16 %v1687, %v1687
    %v1689 = vld [vmem:[%s5] sm:$0xf]
    %v1690 = vld [vmem:[%s5 + $0x4] sm:$0xf]
    %v1691 = vld [vmem:[%s5 + $0x8] sm:$0xf]
    %v1692 = vld [vmem:[%s5 + $0xc] sm:$0xf]
    %v1693 = vld [vmem:[%s5 + $0x10] sm:$0xf]
    %v1694 = vld [vmem:[%s5 + $0x14] sm:$0xf]
    %v1695 = vld [vmem:[%s5 + $0x18] sm:$0xf]
    %v1696 = vld [vmem:[%s5 + $0x1c] sm:$0xf]
    %v1697 = vld [vmem:[%s5 + $0x20] sm:$0xf]
    %v1698 = vld [vmem:[%s5 + $0x24] sm:$0xf]
    %v1699 = vld [vmem:[%s5 + $0x28] sm:$0xf]
    %v1700 = vld [vmem:[%s5 + $0x2c] sm:$0xf]
    %v1701 = vld [vmem:[%s5 + $0x30] sm:$0xf]
    %v1702 = vld [vmem:[%s5 + $0x34] sm:$0xf]
    %v1703 = vld [vmem:[%s5 + $0x38] sm:$0xf]
    %v1704 = vld [vmem:[%s5 + $0x3c] sm:$0xf]
    %v1705 = vld [vmem:[%s6] sm:$0x1]
    %v1707 = vperm.slane %v1705, 0
    %v1725 = vunpack.c.l.b16 %v1689
    %v1726 = vunpack.c.l.b16 %v1690
    %v1727 = vunpack.c.l.b16 %v1691
    %v1728 = vunpack.c.l.b16 %v1692
    %v1729 = vunpack.c.l.b16 %v1693
    %v1730 = vunpack.c.l.b16 %v1694
    %v1731 = vunpack.c.l.b16 %v1695
    %v1732 = vunpack.c.l.b16 %v1696
    %v1733 = vunpack.c.l.b16 %v1697
    %v1734 = vunpack.c.l.b16 %v1698
    %v1735 = vunpack.c.l.b16 %v1699
    %v1736 = vunpack.c.l.b16 %v1700
    %v1737 = vunpack.c.l.b16 %v1701
    %v1738 = vunpack.c.l.b16 %v1702
    %v1739 = vunpack.c.l.b16 %v1703
    %v1740 = vunpack.c.l.b16 %v1704
    %v1741 = vpack.c.b16 %v1726, %v1725
    %v1742 = vpack.c.b16 %v1728, %v1727
    %v1743 = vpack.c.b16 %v1730, %v1729
    %v1744 = vpack.c.b16 %v1732, %v1731
    %v1745 = vpack.c.b16 %v1734, %v1733
    %v1746 = vpack.c.b16 %v1736, %v1735
    %v1747 = vpack.c.b16 %v1738, %v1737
    %v1748 = vpack.c.b16 %v1740, %v1739
    %1757 = vmatpush.bf16.msra.mxu0 %v1748
    %1758 = vmatpush.bf16.msra.mxu0 %v1747
    %1759 = vmatpush.bf16.msra.mxu0 %v1746
    %1760 = vmatpush.bf16.msra.mxu0 %v1745
    %1761 = vmatpush.bf16.msra.mxu0 %v1744
    %1762 = vmatpush.bf16.msra.mxu0 %v1743
    %1763 = vmatpush.bf16.msra.mxu0 %v1742
    %1764 = vmatpush.bf16.msra.mxu0 %v1741
    %1765 = vmatmul.bf16.gmra.mxu0 %v1688
    %v1766 = vpop.f32.mrf.mxu0
    %v1767 = vadd.f32 %v1707, %v1766
    %v1768 = vpop.f32.mrf.mxu0
    %1769 = vdwg.mxu0
    %1770 = vst [vmem:[%s7] sm:$0xff] %v1767
    // Predicated region
    $region38: #{_lambda_.1} parent=1 // pred_check
      _
    $region39: #{_lambda_.1} parent=1 // pred_check_branch
      %1772 = sbr.rel (0) target = $region41
    $region40: #{_lambda_.1} parent=1 // pred_region
      _
    $region41: #{_lambda_.1} parent=1 // pred_fallthru
      _
    // Predicated region
    $region42: #{_lambda_.1} parent=1 // pred_check
      _
    $region43: #{_lambda_.1} parent=1 // pred_check_branch
      %1774 = sbr.rel (0) target = $region45
    $region44: #{_lambda_.1} parent=1 // pred_region
      _
    $region45: #{_lambda_.1} parent=1 // pred_fallthru
      _
    %1775 = vsyncpa [#allocation4], 1
    %1776 = vsyncpa [#allocation6], 1

</llo_original>
